<compile_context>
chip_gen: v7x
topology: tpu7x:2x2x1
jax: 0.10.0
libtpu: 0.0.40
codegen_flags: <defaults>
</compile_context>

<pallas_src>
import jax
import jax.numpy as jnp
from jax.experimental import pallas as pl
from jax.experimental.pallas import tpu as pltpu

EPS = 1e-5                       # PyTorch BatchNorm2d default eps
_VMEM_LIMIT = 48 * 1024 * 1024   # safe on v5e/v6e (128 MiB) and v7x (64 MiB)


def _pick_tn(cout):
    """Output-channel tile: full when small, else a 128/256 multiple."""
    if cout <= 256:
        return cout
    for cand in (256, 128):
        if cout % cand == 0:
            return cand
    return cout


# ----------------------------- fused conv kernel -----------------------------
# For one batch element and one tile of output channels:
#   act = relu(x * scale + bias) * halo_mask         (BN+ReLU prologue, VPU)
#   out = sum_taps  act[shifted] @ W[tap]            (k*k shifted MXU matmuls)
#   out += residual                                  (optional fused epilogue)

def _make_conv_kernel(ksize, stride, n_phase, ho, wo, has_mask, has_res):
    def kernel(*refs):
        x_ref = refs[0]
        pos = 1
        m_ref = None
        if has_mask:
            m_ref = refs[pos]
            pos += 1
        scale_ref = refs[pos]
        bias_ref = refs[pos + 1]
        w_ref = refs[pos + 2]
        pos += 3
        res_ref = refs[pos] if has_res else None
        o_ref = refs[-1]

        cin = x_ref.shape[-1]
        tn = o_ref.shape[-1]
        scale = scale_ref[...][None]          # (1, 1, Cin)
        bias = bias_ref[...][None]

        # BN + ReLU prologue on every spatial phase (VPU filler under the MXU).
        acts = []
        for p in range(n_phase):
            xp = x_ref[0, p].astype(jnp.float32)          # (Hph, Wph, Cin)
            a = jnp.maximum(xp * scale + bias, 0.0)
            if has_mask:
                a = a * m_ref[p]                          # zero the conv halo
            acts.append(a)

        # k*k shifted taps accumulated in f32 (implicit im2col, never hits HBM).
        acc = jnp.zeros((ho * wo, tn), jnp.float32)
        for dy in range(ksize):
            for dx in range(ksize):
                ph = (dy % stride) * stride + (dx % stride)
                qy, qx = dy // stride, dx // stride
                tap = acts[ph][qy:qy + ho, qx:qx + wo, :]
                acc = acc + jnp.dot(tap.reshape(ho * wo, cin),
                                    w_ref[dy * ksize + dx],
                                    preferred_element_type=jnp.float32)

        if has_res:
            acc = acc + res_ref[0].astype(jnp.float32)    # fused residual add
        o_ref[0] = acc.astype(o_ref.dtype)

    return kernel


def _pad_and_phase_split(x, ksize, stride, pad, ho, wo):
    """Zero-pad NHWC x and split into stride^2 spatial phases (cheap XLA glue).

    Returns (N, stride*stride, Hph, Wph, C) such that every conv tap inside the
    kernel is a plain static (unstrided) slice of one phase.
    """
    n, h, w, c = x.shape
    qmax = (ksize - 1) // stride
    hph, wph = ho + qmax, wo + qmax
    hi = stride * hph - h - pad            # high-side padding
    wi = stride * wph - w - pad
    assert hi >= 0 and wi >= 0
    xp = jnp.pad(x, ((0, 0), (pad, hi), (pad, wi), (0, 0)))
    if stride == 1:
        return xp[:, None]
    phases = [xp[:, a::stride, b::stride, :]
              for a in range(stride) for b in range(stride)]
    return jnp.stack(phases, axis=1)


def conv_bn_relu(x, scale, bias, wmat, ksize, stride, residual=None):
    """NHWC fused op: conv_k( relu(x*scale + bias) ) [+ residual]."""
    if ksize == 1 and stride > 1:          # 1x1 conv: pre-apply the stride (exact)
        x = x[:, ::stride, ::stride, :]
        stride = 1
    n, h, w, cin = x.shape
    pad = 1 if ksize == 3 else 0
    ho = (h + 2 * pad - ksize) // stride + 1
    wo = (w + 2 * pad - ksize) // stride + 1
    cout = wmat.shape[-1]
    n_phase = stride * stride
    has_mask = pad > 0
    has_res = residual is not None

    xph = _pad_and_phase_split(x, ksize, stride, pad, ho, wo)
    _, _, hph, wph, _ = xph.shape

    tn = _pick_tn(cout)
    grid = (n, cout // tn)

    in_specs = [pl.BlockSpec((1, n_phase, hph, wph, cin),
                             lambda b, j: (b, 0, 0, 0, 0))]
    args = [xph]
    if has_mask:
        mask = _pad_and_phase_split(jnp.ones((1, h, w, 1), jnp.float32),
                                    ksize, stride, pad, ho, wo)[0]
        in_specs.append(pl.BlockSpec((n_phase, hph, wph, 1),
                                     lambda b, j: (0, 0, 0, 0)))
        args.append(mask)
    in_specs += [pl.BlockSpec((1, cin), lambda b, j: (0, 0)),
                 pl.BlockSpec((1, cin), lambda b, j: (0, 0)),
                 pl.BlockSpec((ksize * ksize, cin, tn), lambda b, j: (0, 0, j))]
    args += [scale.reshape(1, cin).astype(jnp.float32),
             bias.reshape(1, cin).astype(jnp.float32),
             wmat]
    if has_res:
        in_specs.append(pl.BlockSpec((1, ho * wo, tn), lambda b, j: (b, 0, j)))
        args.append(residual.reshape(n, ho * wo, cout))

    kernel = _make_conv_kernel(ksize, stride, n_phase, ho, wo, has_mask, has_res)
    out = pl.pallas_call(
        kernel,
        out_shape=jax.ShapeDtypeStruct((n, ho * wo, cout), jnp.float32),
        grid=grid,
        in_specs=in_specs,
        out_specs=pl.BlockSpec((1, ho * wo, tn), lambda b, j: (b, 0, j)),
        compiler_params=pltpu.CompilerParams(
            dimension_semantics=("parallel", "parallel"),
            vmem_limit_bytes=_VMEM_LIMIT),
    )(*args)
    return out.reshape(n, ho, wo, cout)


# ------------------------------- BasicBlock ---------------------------------

def basic_block_forward(p, x_nhwc):
    stride = p['stride']
    # conv1: fused [bn1 + relu] -> 3x3 (stride)
    h = conv_bn_relu(x_nhwc, p['s1'], p['b1'], p['w1m'], 3, stride)
    if p['equal']:
        residual = x_nhwc                                  # identity skip (raw x)
    else:
        # shortcut: fused [bn1 + relu] -> 1x1 (stride); the cheap prologue is
        # recomputed instead of materializing relu(bn1(x)) in HBM.
        residual = conv_bn_relu(x_nhwc, p['s1'], p['b1'], p['wscm'], 1, stride)
    # conv2: fused [bn2 + relu] -> 3x3 (1) -> + residual
    # TODO(synk): dropout (drop_rate > 0, training mode) between bn2/relu and
    # conv2 is not implemented; module default drop_rate=0.0 makes it a no-op.
    return conv_bn_relu(h, p['s2'], p['b2'], p['w2m'], 3, 1, residual=residual)


# ----------------------------- parameter init -------------------------------

def _conv_w(key, cout, cin, ksz):
    std = (2.0 / (ksz * ksz * cout)) ** 0.5        # WRN kaiming-style init
    return jax.random.normal(key, (cout, cin, ksz, ksz), jnp.float32) * std


def _fold_w(w_oihw):
    cout, cin, kh, kw = w_oihw.shape
    return jnp.transpose(w_oihw, (2, 3, 1, 0)).reshape(kh * kw, cin, cout)


def _bn_p(key, c):
    k1, k2, k3, k4 = jax.random.split(key, 4)
    return dict(gamma=jax.random.uniform(k1, (c,), jnp.float32, 0.5, 1.5),
                beta=jax.random.normal(k2, (c,), jnp.float32) * 0.1,
                mean=jax.random.normal(k3, (c,), jnp.float32) * 0.1,
                var=jax.random.uniform(k4, (c,), jnp.float32, 0.5, 1.5))


def _fold_bn(bn):
    scale = bn['gamma'] / jnp.sqrt(bn['var'] + EPS)
    bias = bn['beta'] - bn['mean'] * scale
    return scale, bias


def init_basic_block(key, in_planes, out_planes, stride, res_param):
    equal = in_planes == out_planes
    if equal and stride != 1:
        raise ValueError("identity shortcut requires stride == 1 "
                         "(standard WRN never pairs equal in/out with stride > 1)")
    ks = jax.random.split(key, 5)
    p = dict(equal=equal, stride=stride,
             res_param=res_param,                  # stored like the module; unused in forward
             bn1=_bn_p(ks[0], in_planes),
             w1=_conv_w(ks[1], out_planes, in_planes, 3),
             bn2=_bn_p(ks[2], out_planes),
             w2=_conv_w(ks[3], out_planes, out_planes, 3))
    if not equal:
        p['w_sc'] = _conv_w(ks[4], out_planes, in_planes, 1)
    # Kernel-ready folded parameters, precomputed once (not per forward call).
    p['s1'], p['b1'] = _fold_bn(p['bn1'])
    p['s2'], p['b2'] = _fold_bn(p['bn2'])
    p['w1m'] = _fold_w(p['w1'])
    p['w2m'] = _fold_w(p['w2'])
    if not equal:
        p['wscm'] = _fold_w(p['w_sc'])
    return p


def init_network_block(key, nb_layers, in_planes, out_planes, stride,
                       drop_rate=0.0, ind=0, res_param=0.1):
    keys = jax.random.split(key, nb_layers)
    layers = [init_basic_block(keys[i],
                               in_planes if i == 0 else out_planes,
                               out_planes,
                               stride if i == 0 else 1,
                               res_param)
              for i in range(nb_layers)]
    return dict(layers=layers, nb_layers=nb_layers, ind=ind, res_param=res_param)


# --------------------------- NetworkBlock.forward ----------------------------

def network_block_forward(nb, x_nchw, step='forward', first=True, inter=False):
    x = jnp.transpose(x_nchw, (0, 2, 3, 1))       # NCHW -> NHWC (kernel layout)
    layers, ind = nb['layers'], nb['ind']
    orig_feature = None
    if ind == 0:
        if 'forward' in step:
            for p in layers:
                x = basic_block_forward(p, x)
        elif 'backward' in step:
            # TODO(synk): block(x, step='backward') lives inside the (unshown)
            # block module; no clean Pallas equivalent without its definition.
            raise NotImplementedError("backward step not implemented")
    elif ind > 0:
        if 'forward' in step:
            if first:
                if not inter:
                    for p in layers:
                        x = basic_block_forward(p, x)
                else:
                    for idx, p in enumerate(layers):
                        x = basic_block_forward(p, x)
                        if idx + 1 == ind:
                            orig_feature = x
            else:
                for idx, p in enumerate(layers):
                    if idx + 1 > ind:
                        x = basic_block_forward(p, x)
        elif 'backward' in step:
            raise NotImplementedError("backward step not implemented")  # TODO(synk)
    x_out = jnp.transpose(x, (0, 3, 1, 2))        # back to NCHW
    if inter:
        return x_out, jnp.transpose(orig_feature, (0, 3, 1, 2))
    return x_out


# ------------------------ pure-JAX reference (check) -------------------------

def _ref_conv(x, w, stride, pad):
    return jax.lax.conv_general_dilated(
        x, w, (stride, stride), [(pad, pad), (pad, pad)],
        dimension_numbers=('NCHW', 'OIHW', 'NCHW'))


def _ref_bn_relu(x, bn):
    s = (bn['gamma'] / jnp.sqrt(bn['var'] + EPS)).reshape(1, -1, 1, 1)
    b = (bn['beta'] - bn['mean'] * bn['gamma'] / jnp.sqrt(bn['var'] + EPS)).reshape(1, -1, 1, 1)
    return jnp.maximum(x * s + b, 0.0)


def _ref_block(p, x):
    act = _ref_bn_relu(x, p['bn1'])
    if p['equal']:
        residual, out = x, act
    else:
        out = act
        residual = _ref_conv(act, p['w_sc'], p['stride'], 0)
    h = _ref_conv(out, p['w1'], p['stride'], 1)
    h = _ref_bn_relu(h, p['bn2'])
    h = _ref_conv(h, p['w2'], 1, 1)
    return residual + h


def _ref_network_block(nb, x):
    for p in nb['layers']:
        x = _ref_block(p, x)
    return x


if __name__ == "__main__":
    key = jax.random.PRNGKey(0)
    k_param, k_x = jax.random.split(key)

    # NetworkBlock(nb_layers=2, in_planes=4, out_planes=8, block=BasicBlock, stride=2)
    nb = init_network_block(k_param, nb_layers=2, in_planes=4, out_planes=8,
                            stride=2, drop_rate=0.0, ind=0, res_param=0.1)

    x = jax.random.normal(k_x, (2, 4, 16, 16), jnp.float32)   # NCHW, like PyTorch

    y = network_block_forward(nb, x, step='forward', first=True, inter=False)
    y = jax.block_until_ready(y)

    y_ref = _ref_network_block(nb, x)
    assert y.shape == (2, 8, 8, 8), y.shape
    err = float(jnp.max(jnp.abs(y - y_ref)))
    assert jnp.allclose(y, y_ref, atol=1e-4, rtol=1e-4), err

    print("KERNEL_OK")
</pallas_src>

<mosaic_0001>
module attributes {stable_mosaic.version = 11 : i64} {
  func.func @kernel(%arg0: i32, %arg1: i32, %arg2: memref<1x4x9x9x4xf32, #tpu.memory_space<vmem>>, %arg3: memref<4x9x9x1xf32, #tpu.memory_space<vmem>>, %arg4: memref<1x4xf32, #tpu.memory_space<vmem>>, %arg5: memref<1x4xf32, #tpu.memory_space<vmem>>, %arg6: memref<9x4x8xf32, #tpu.memory_space<vmem>>, %arg7: memref<1x64x8xf32, #tpu.memory_space<vmem>>) attributes {dimension_semantics = [#tpu.dimension_semantics<parallel>, #tpu.dimension_semantics<parallel>], iteration_bounds = array<i64: 2, 1>, scalar_prefetch = 0 : i64, scratch_operands = 0 : i64, tpu.core_type = #tpu.core_type<tc>, window_params = [{transform_indices = @transform_0, window_bounds = array<i64: 1, 4, 9, 9, 4>}, {pipeline_mode = #tpu.pipeline_mode<synchronous>, transform_indices = @transform_1, window_bounds = array<i64: 4, 9, 9, 1>}, {pipeline_mode = #tpu.pipeline_mode<synchronous>, transform_indices = @transform_2, window_bounds = array<i64: 1, 4>}, {pipeline_mode = #tpu.pipeline_mode<synchronous>, transform_indices = @transform_3, window_bounds = array<i64: 1, 4>}, {transform_indices = @transform_4, window_bounds = array<i64: 9, 4, 8>}, {transform_indices = @transform_5, window_bounds = array<i64: 1, 64, 8>}]} {
    %c0 = arith.constant 0 : index
    %c0_0 = arith.constant 0 : index
    %0 = vector.load %arg4[%c0, %c0_0] : memref<1x4xf32, #tpu.memory_space<vmem>>, vector<1x4xf32>
    %1 = vector.shape_cast %0 : vector<1x4xf32> to vector<1x1x4xf32>
    %c0_1 = arith.constant 0 : index
    %c0_2 = arith.constant 0 : index
    %2 = vector.load %arg5[%c0_1, %c0_2] : memref<1x4xf32, #tpu.memory_space<vmem>>, vector<1x4xf32>
    %3 = vector.shape_cast %2 : vector<1x4xf32> to vector<1x1x4xf32>
    %c0_3 = arith.constant 0 : index
    %c0_4 = arith.constant 0 : index
    %c0_5 = arith.constant 0 : index
    %c0_6 = arith.constant 0 : index
    %c0_7 = arith.constant 0 : index
    %4 = vector.load %arg2[%c0_3, %c0_4, %c0_5, %c0_6, %c0_7] : memref<1x4x9x9x4xf32, #tpu.memory_space<vmem>>, vector<1x1x9x9x4xf32>
    %5 = vector.shape_cast %4 : vector<1x1x9x9x4xf32> to vector<9x9x4xf32>
    %6 = vector.broadcast %1 : vector<1x1x4xf32> to vector<9x9x4xf32>
    %7 = arith.mulf %5, %6 : vector<9x9x4xf32>
    %8 = vector.broadcast %3 : vector<1x1x4xf32> to vector<9x9x4xf32>
    %9 = arith.addf %7, %8 : vector<9x9x4xf32>
    %cst = arith.constant 0.000000e+00 : f32
    %10 = vector.broadcast %cst : f32 to vector<9x9x4xf32>
    %11 = arith.maximumf %9, %10 : vector<9x9x4xf32>
    %c0_8 = arith.constant 0 : index
    %c0_9 = arith.constant 0 : index
    %c0_10 = arith.constant 0 : index
    %c0_11 = arith.constant 0 : index
    %12 = vector.load %arg3[%c0_8, %c0_9, %c0_10, %c0_11] : memref<4x9x9x1xf32, #tpu.memory_space<vmem>>, vector<1x9x9x1xf32>
    %13 = vector.shape_cast %12 : vector<1x9x9x1xf32> to vector<9x9x1xf32>
    %14 = vector.broadcast %13 : vector<9x9x1xf32> to vector<9x9x4xf32>
    %15 = arith.mulf %11, %14 : vector<9x9x4xf32>
    %c0_12 = arith.constant 0 : index
    %c1 = arith.constant 1 : index
    %c0_13 = arith.constant 0 : index
    %c0_14 = arith.constant 0 : index
    %c0_15 = arith.constant 0 : index
    %16 = vector.load %arg2[%c0_12, %c1, %c0_13, %c0_14, %c0_15] : memref<1x4x9x9x4xf32, #tpu.memory_space<vmem>>, vector<1x1x9x9x4xf32>
    %17 = vector.shape_cast %16 : vector<1x1x9x9x4xf32> to vector<9x9x4xf32>
    %18 = vector.broadcast %1 : vector<1x1x4xf32> to vector<9x9x4xf32>
    %19 = arith.mulf %17, %18 : vector<9x9x4xf32>
    %20 = vector.broadcast %3 : vector<1x1x4xf32> to vector<9x9x4xf32>
    %21 = arith.addf %19, %20 : vector<9x9x4xf32>
    %cst_16 = arith.constant 0.000000e+00 : f32
    %22 = vector.broadcast %cst_16 : f32 to vector<9x9x4xf32>
    %23 = arith.maximumf %21, %22 : vector<9x9x4xf32>
    %c1_17 = arith.constant 1 : index
    %c0_18 = arith.constant 0 : index
    %c0_19 = arith.constant 0 : index
    %c0_20 = arith.constant 0 : index
    %24 = vector.load %arg3[%c1_17, %c0_18, %c0_19, %c0_20] : memref<4x9x9x1xf32, #tpu.memory_space<vmem>>, vector<1x9x9x1xf32>
    %25 = vector.shape_cast %24 : vector<1x9x9x1xf32> to vector<9x9x1xf32>
    %26 = vector.broadcast %25 : vector<9x9x1xf32> to vector<9x9x4xf32>
    %27 = arith.mulf %23, %26 : vector<9x9x4xf32>
    %c0_21 = arith.constant 0 : index
    %c2 = arith.constant 2 : index
    %c0_22 = arith.constant 0 : index
    %c0_23 = arith.constant 0 : index
    %c0_24 = arith.constant 0 : index
    %28 = vector.load %arg2[%c0_21, %c2, %c0_22, %c0_23, %c0_24] : memref<1x4x9x9x4xf32, #tpu.memory_space<vmem>>, vector<1x1x9x9x4xf32>
    %29 = vector.shape_cast %28 : vector<1x1x9x9x4xf32> to vector<9x9x4xf32>
    %30 = vector.broadcast %1 : vector<1x1x4xf32> to vector<9x9x4xf32>
    %31 = arith.mulf %29, %30 : vector<9x9x4xf32>
    %32 = vector.broadcast %3 : vector<1x1x4xf32> to vector<9x9x4xf32>
    %33 = arith.addf %31, %32 : vector<9x9x4xf32>
    %cst_25 = arith.constant 0.000000e+00 : f32
    %34 = vector.broadcast %cst_25 : f32 to vector<9x9x4xf32>
    %35 = arith.maximumf %33, %34 : vector<9x9x4xf32>
    %c2_26 = arith.constant 2 : index
    %c0_27 = arith.constant 0 : index
    %c0_28 = arith.constant 0 : index
    %c0_29 = arith.constant 0 : index
    %36 = vector.load %arg3[%c2_26, %c0_27, %c0_28, %c0_29] : memref<4x9x9x1xf32, #tpu.memory_space<vmem>>, vector<1x9x9x1xf32>
    %37 = vector.shape_cast %36 : vector<1x9x9x1xf32> to vector<9x9x1xf32>
    %38 = vector.broadcast %37 : vector<9x9x1xf32> to vector<9x9x4xf32>
    %39 = arith.mulf %35, %38 : vector<9x9x4xf32>
    %c0_30 = arith.constant 0 : index
    %c3 = arith.constant 3 : index
    %c0_31 = arith.constant 0 : index
    %c0_32 = arith.constant 0 : index
    %c0_33 = arith.constant 0 : index
    %40 = vector.load %arg2[%c0_30, %c3, %c0_31, %c0_32, %c0_33] : memref<1x4x9x9x4xf32, #tpu.memory_space<vmem>>, vector<1x1x9x9x4xf32>
    %41 = vector.shape_cast %40 : vector<1x1x9x9x4xf32> to vector<9x9x4xf32>
    %42 = vector.broadcast %1 : vector<1x1x4xf32> to vector<9x9x4xf32>
    %43 = arith.mulf %41, %42 : vector<9x9x4xf32>
    %44 = vector.broadcast %3 : vector<1x1x4xf32> to vector<9x9x4xf32>
    %45 = arith.addf %43, %44 : vector<9x9x4xf32>
    %cst_34 = arith.constant 0.000000e+00 : f32
    %46 = vector.broadcast %cst_34 : f32 to vector<9x9x4xf32>
    %47 = arith.maximumf %45, %46 : vector<9x9x4xf32>
    %c3_35 = arith.constant 3 : index
    %c0_36 = arith.constant 0 : index
    %c0_37 = arith.constant 0 : index
    %c0_38 = arith.constant 0 : index
    %48 = vector.load %arg3[%c3_35, %c0_36, %c0_37, %c0_38] : memref<4x9x9x1xf32, #tpu.memory_space<vmem>>, vector<1x9x9x1xf32>
    %49 = vector.shape_cast %48 : vector<1x9x9x1xf32> to vector<9x9x1xf32>
    %50 = vector.broadcast %49 : vector<9x9x1xf32> to vector<9x9x4xf32>
    %51 = arith.mulf %47, %50 : vector<9x9x4xf32>
    %cst_39 = arith.constant 0.000000e+00 : f32
    %52 = vector.broadcast %cst_39 : f32 to vector<64x8xf32>
    %53 = vector.extract_strided_slice %15 {offsets = [0, 0, 0], sizes = [8, 8, 4], strides = [1, 1, 1]} : vector<9x9x4xf32> to vector<8x8x4xf32>
    %54 = vector.shape_cast %53 : vector<8x8x4xf32> to vector<64x4xf32>
    %c0_40 = arith.constant 0 : index
    %c0_41 = arith.constant 0 : index
    %c0_42 = arith.constant 0 : index
    %55 = vector.load %arg6[%c0_40, %c0_41, %c0_42] : memref<9x4x8xf32, #tpu.memory_space<vmem>>, vector<1x4x8xf32>
    %56 = vector.shape_cast %55 : vector<1x4x8xf32> to vector<4x8xf32>
    %cst_43 = arith.constant dense<0.000000e+00> : vector<64x8xf32>
    %57 = tpu.matmul %54, %56, %cst_43 {dimension_numbers = #tpu.dot_dimension_numbers<[1], [0], [0], [1], [0, 0, 1, 1], [], []>} : vector<64x4xf32>, vector<4x8xf32>, vector<64x8xf32> -> vector<64x8xf32>
    %58 = arith.addf %52, %57 : vector<64x8xf32>
    %59 = vector.extract_strided_slice %27 {offsets = [0, 0, 0], sizes = [8, 8, 4], strides = [1, 1, 1]} : vector<9x9x4xf32> to vector<8x8x4xf32>
    %60 = vector.shape_cast %59 : vector<8x8x4xf32> to vector<64x4xf32>
    %c1_44 = arith.constant 1 : index
    %c0_45 = arith.constant 0 : index
    %c0_46 = arith.constant 0 : index
    %61 = vector.load %arg6[%c1_44, %c0_45, %c0_46] : memref<9x4x8xf32, #tpu.memory_space<vmem>>, vector<1x4x8xf32>
    %62 = vector.shape_cast %61 : vector<1x4x8xf32> to vector<4x8xf32>
    %cst_47 = arith.constant dense<0.000000e+00> : vector<64x8xf32>
    %63 = tpu.matmul %60, %62, %cst_47 {dimension_numbers = #tpu.dot_dimension_numbers<[1], [0], [0], [1], [0, 0, 1, 1], [], []>} : vector<64x4xf32>, vector<4x8xf32>, vector<64x8xf32> -> vector<64x8xf32>
    %64 = arith.addf %58, %63 : vector<64x8xf32>
    %65 = vector.extract_strided_slice %15 {offsets = [0, 1, 0], sizes = [8, 8, 4], strides = [1, 1, 1]} : vector<9x9x4xf32> to vector<8x8x4xf32>
    %66 = vector.shape_cast %65 : vector<8x8x4xf32> to vector<64x4xf32>
    %c2_48 = arith.constant 2 : index
    %c0_49 = arith.constant 0 : index
    %c0_50 = arith.constant 0 : index
    %67 = vector.load %arg6[%c2_48, %c0_49, %c0_50] : memref<9x4x8xf32, #tpu.memory_space<vmem>>, vector<1x4x8xf32>
    %68 = vector.shape_cast %67 : vector<1x4x8xf32> to vector<4x8xf32>
    %cst_51 = arith.constant dense<0.000000e+00> : vector<64x8xf32>
    %69 = tpu.matmul %66, %68, %cst_51 {dimension_numbers = #tpu.dot_dimension_numbers<[1], [0], [0], [1], [0, 0, 1, 1], [], []>} : vector<64x4xf32>, vector<4x8xf32>, vector<64x8xf32> -> vector<64x8xf32>
    %70 = arith.addf %64, %69 : vector<64x8xf32>
    %71 = vector.extract_strided_slice %39 {offsets = [0, 0, 0], sizes = [8, 8, 4], strides = [1, 1, 1]} : vector<9x9x4xf32> to vector<8x8x4xf32>
    %72 = vector.shape_cast %71 : vector<8x8x4xf32> to vector<64x4xf32>
    %c3_52 = arith.constant 3 : index
    %c0_53 = arith.constant 0 : index
    %c0_54 = arith.constant 0 : index
    %73 = vector.load %arg6[%c3_52, %c0_53, %c0_54] : memref<9x4x8xf32, #tpu.memory_space<vmem>>, vector<1x4x8xf32>
    %74 = vector.shape_cast %73 : vector<1x4x8xf32> to vector<4x8xf32>
    %cst_55 = arith.constant dense<0.000000e+00> : vector<64x8xf32>
    %75 = tpu.matmul %72, %74, %cst_55 {dimension_numbers = #tpu.dot_dimension_numbers<[1], [0], [0], [1], [0, 0, 1, 1], [], []>} : vector<64x4xf32>, vector<4x8xf32>, vector<64x8xf32> -> vector<64x8xf32>
    %76 = arith.addf %70, %75 : vector<64x8xf32>
    %77 = vector.extract_strided_slice %51 {offsets = [0, 0, 0], sizes = [8, 8, 4], strides = [1, 1, 1]} : vector<9x9x4xf32> to vector<8x8x4xf32>
    %78 = vector.shape_cast %77 : vector<8x8x4xf32> to vector<64x4xf32>
    %c4 = arith.constant 4 : index
    %c0_56 = arith.constant 0 : index
    %c0_57 = arith.constant 0 : index
    %79 = vector.load %arg6[%c4, %c0_56, %c0_57] : memref<9x4x8xf32, #tpu.memory_space<vmem>>, vector<1x4x8xf32>
    %80 = vector.shape_cast %79 : vector<1x4x8xf32> to vector<4x8xf32>
    %cst_58 = arith.constant dense<0.000000e+00> : vector<64x8xf32>
    %81 = tpu.matmul %78, %80, %cst_58 {dimension_numbers = #tpu.dot_dimension_numbers<[1], [0], [0], [1], [0, 0, 1, 1], [], []>} : vector<64x4xf32>, vector<4x8xf32>, vector<64x8xf32> -> vector<64x8xf32>
    %82 = arith.addf %76, %81 : vector<64x8xf32>
    %83 = vector.extract_strided_slice %39 {offsets = [0, 1, 0], sizes = [8, 8, 4], strides = [1, 1, 1]} : vector<9x9x4xf32> to vector<8x8x4xf32>
    %84 = vector.shape_cast %83 : vector<8x8x4xf32> to vector<64x4xf32>
    %c5 = arith.constant 5 : index
    %c0_59 = arith.constant 0 : index
    %c0_60 = arith.constant 0 : index
    %85 = vector.load %arg6[%c5, %c0_59, %c0_60] : memref<9x4x8xf32, #tpu.memory_space<vmem>>, vector<1x4x8xf32>
    %86 = vector.shape_cast %85 : vector<1x4x8xf32> to vector<4x8xf32>
    %cst_61 = arith.constant dense<0.000000e+00> : vector<64x8xf32>
    %87 = tpu.matmul %84, %86, %cst_61 {dimension_numbers = #tpu.dot_dimension_numbers<[1], [0], [0], [1], [0, 0, 1, 1], [], []>} : vector<64x4xf32>, vector<4x8xf32>, vector<64x8xf32> -> vector<64x8xf32>
    %88 = arith.addf %82, %87 : vector<64x8xf32>
    %89 = vector.extract_strided_slice %15 {offsets = [1, 0, 0], sizes = [8, 8, 4], strides = [1, 1, 1]} : vector<9x9x4xf32> to vector<8x8x4xf32>
    %90 = vector.shape_cast %89 : vector<8x8x4xf32> to vector<64x4xf32>
    %c6 = arith.constant 6 : index
    %c0_62 = arith.constant 0 : index
    %c0_63 = arith.constant 0 : index
    %91 = vector.load %arg6[%c6, %c0_62, %c0_63] : memref<9x4x8xf32, #tpu.memory_space<vmem>>, vector<1x4x8xf32>
    %92 = vector.shape_cast %91 : vector<1x4x8xf32> to vector<4x8xf32>
    %cst_64 = arith.constant dense<0.000000e+00> : vector<64x8xf32>
    %93 = tpu.matmul %90, %92, %cst_64 {dimension_numbers = #tpu.dot_dimension_numbers<[1], [0], [0], [1], [0, 0, 1, 1], [], []>} : vector<64x4xf32>, vector<4x8xf32>, vector<64x8xf32> -> vector<64x8xf32>
    %94 = arith.addf %88, %93 : vector<64x8xf32>
    %95 = vector.extract_strided_slice %27 {offsets = [1, 0, 0], sizes = [8, 8, 4], strides = [1, 1, 1]} : vector<9x9x4xf32> to vector<8x8x4xf32>
    %96 = vector.shape_cast %95 : vector<8x8x4xf32> to vector<64x4xf32>
    %c7 = arith.constant 7 : index
    %c0_65 = arith.constant 0 : index
    %c0_66 = arith.constant 0 : index
    %97 = vector.load %arg6[%c7, %c0_65, %c0_66] : memref<9x4x8xf32, #tpu.memory_space<vmem>>, vector<1x4x8xf32>
    %98 = vector.shape_cast %97 : vector<1x4x8xf32> to vector<4x8xf32>
    %cst_67 = arith.constant dense<0.000000e+00> : vector<64x8xf32>
    %99 = tpu.matmul %96, %98, %cst_67 {dimension_numbers = #tpu.dot_dimension_numbers<[1], [0], [0], [1], [0, 0, 1, 1], [], []>} : vector<64x4xf32>, vector<4x8xf32>, vector<64x8xf32> -> vector<64x8xf32>
    %100 = arith.addf %94, %99 : vector<64x8xf32>
    %101 = vector.extract_strided_slice %15 {offsets = [1, 1, 0], sizes = [8, 8, 4], strides = [1, 1, 1]} : vector<9x9x4xf32> to vector<8x8x4xf32>
    %102 = vector.shape_cast %101 : vector<8x8x4xf32> to vector<64x4xf32>
    %c8 = arith.constant 8 : index
    %c0_68 = arith.constant 0 : index
    %c0_69 = arith.constant 0 : index
    %103 = vector.load %arg6[%c8, %c0_68, %c0_69] : memref<9x4x8xf32, #tpu.memory_space<vmem>>, vector<1x4x8xf32>
    %104 = vector.shape_cast %103 : vector<1x4x8xf32> to vector<4x8xf32>
    %cst_70 = arith.constant dense<0.000000e+00> : vector<64x8xf32>
    %105 = tpu.matmul %102, %104, %cst_70 {dimension_numbers = #tpu.dot_dimension_numbers<[1], [0], [0], [1], [0, 0, 1, 1], [], []>} : vector<64x4xf32>, vector<4x8xf32>, vector<64x8xf32> -> vector<64x8xf32>
    %106 = arith.addf %100, %105 : vector<64x8xf32>
    %c0_71 = arith.constant 0 : index
    %c0_72 = arith.constant 0 : index
    %c0_73 = arith.constant 0 : index
    %107 = vector.load %arg7[%c0_71, %c0_72, %c0_73] : memref<1x64x8xf32, #tpu.memory_space<vmem>>, vector<1x64x8xf32>
    %108 = vector.shape_cast %107 : vector<1x64x8xf32> to vector<64x8xf32>
    %109 = vector.shape_cast %106 : vector<64x8xf32> to vector<1x64x8xf32>
    tpu.vector_store %arg7[%c0_71, %c0_72, %c0_73], %109 {strides = array<i32>} : memref<1x64x8xf32, #tpu.memory_space<vmem>>, vector<1x64x8xf32>,
    return
  }
  func.func @transform_0(%arg0: i32, %arg1: i32) -> (i32, i32, i32, i32, i32) {
    %c0_i32 = arith.constant 0 : i32
    %c0_i32_0 = arith.constant 0 : i32
    %c0_i32_1 = arith.constant 0 : i32
    %c0_i32_2 = arith.constant 0 : i32
    %c0_i32_3 = arith.constant 0 : i32
    return %arg0, %c0_i32, %c0_i32_0, %c0_i32_1, %c0_i32_2 : i32, i32, i32, i32, i32
  }
  func.func @transform_1(%arg0: i32, %arg1: i32) -> (i32, i32, i32, i32) {
    %c0_i32 = arith.constant 0 : i32
    %c0_i32_0 = arith.constant 0 : i32
    %c0_i32_1 = arith.constant 0 : i32
    %c0_i32_2 = arith.constant 0 : i32
    %c0_i32_3 = arith.constant 0 : i32
    return %c0_i32, %c0_i32_0, %c0_i32_1, %c0_i32_2 : i32, i32, i32, i32
  }
  func.func @transform_2(%arg0: i32, %arg1: i32) -> (i32, i32) {
    %c0_i32 = arith.constant 0 : i32
    %c0_i32_0 = arith.constant 0 : i32
    %c0_i32_1 = arith.constant 0 : i32
    return %c0_i32, %c0_i32_0 : i32, i32
  }
  func.func @transform_3(%arg0: i32, %arg1: i32) -> (i32, i32) {
    %c0_i32 = arith.constant 0 : i32
    %c0_i32_0 = arith.constant 0 : i32
    %c0_i32_1 = arith.constant 0 : i32
    return %c0_i32, %c0_i32_0 : i32, i32
  }
  func.func @transform_4(%arg0: i32, %arg1: i32) -> (i32, i32, i32) {
    %c0_i32 = arith.constant 0 : i32
    %c0_i32_0 = arith.constant 0 : i32
    %c0_i32_1 = arith.constant 0 : i32
    return %c0_i32, %c0_i32_0, %arg1 : i32, i32, i32
  }
  func.func @transform_5(%arg0: i32, %arg1: i32) -> (i32, i32, i32) {
    %c0_i32 = arith.constant 0 : i32
    %c0_i32_0 = arith.constant 0 : i32
    return %arg0, %c0_i32, %arg1 : i32, i32, i32
  }
}

</mosaic_0001>

<llo_original>
// kernel: tpu_custom_call.1
$region0: #{tpu_custom_call.1}
  #allocation0 [shape = 'u32[]', space=smem, size = 0x4, offset = 0x4, fixed_abs, tag = 'smem constant byte address 0x4 - core index']
  #allocation1 [shape = 'u32[144,128]{1,0:T(1,128)}', space=vmem, size = 0x12000, scoped, tag = 'internal scratch']
  %s0 = inlined_call_operand.vmem [shape: f32[2,4,9,9,4], index: 0, kind: input, shape index: {}]
  %s1 = inlined_call_operand.vmem [shape: f32[4,9,9,1], index: 1, kind: input, shape index: {}]
  %s2 = inlined_call_operand.vmem [shape: f32[1,4], index: 2, kind: input, shape index: {}]
  %s3 = inlined_call_operand.vmem [shape: f32[1,4], index: 3, kind: input, shape index: {}]
  %s4 = inlined_call_operand.vmem [shape: f32[9,4,8], index: 4, kind: input, shape index: {}]
  %s5 = inlined_call_operand.vmem [shape: f32[2,64,8], index: 5, kind: output, shape index: {}]
  %s6 = sld [smem:[#allocation0]]
  $region53: #{tpu_custom_call.1} parent=0
    _
  %s8 = ssub.s32 1, %s6
  %s9 = scalar_select 0, %s8, %s6
  loop: start=0, step=1, limit=4
  $region2: #{tpu_custom_call.1} parent=0 // loop_pre_header
    _
  $region3: #{tpu_custom_call.1} parent=0 // loop_header
    %s11 = sphi 0, %s15
    %p12 = scmp.ge.s32.totalorder %s11, 4
    %s18 = sphi 0, %s30
    %s19 = sphi 0, %s26
    %s20 = sphi 0, %s18
    %s21 = sphi 0, %s19
    %s22 = sphi 0, %s20
    %s23 = sphi 0, %s21
    %s33 = sphi 0, %s35
    %s36 = sphi 0, %s33
    %s37 = sphi 0, %s36
    %s53 = sphi 0, %s37
    %s57 = sphi 0, %s57
    %s59 = sphi 0, %s57
    %s60 = sphi 0, %s59
    %s74 = sphi 0, %s60
    %s78 = sphi 0, %s78
    %s80 = sphi 0, %s78
    %s81 = sphi 0, %s80
    %s95 = sphi 0, %s81
    %s99 = sphi 0, %s99
    %s101 = sphi 0, %s99
    %s102 = sphi 0, %s101
    %s116 = sphi 0, %s102
    %s122 = sphi 0, %s124
    %s125 = sphi 0, %s122
    %s126 = sphi 0, %s125
    %s142 = sphi 0, %s126
    %s150 = sphi 0, %s152
    %s153 = sphi 0, %s150
    %s154 = sphi 0, %s153
    %s170 = sphi 0, %s154
  $region4: #{tpu_custom_call.1} parent=0 // loop_header_branch
    %14 = sbr.rel (%p12) target = $region8
  $region5: #{tpu_custom_call.1} parent=0 // loop_body
    %s16 = ssub.s32 %s11, 1
    %s17 = ssub.s32 %s11, 2
    %s24 = sadd.s32 1, %s19
    %p25 = scmp.ge.s32.totalorder %s24, 1
    %s26 = scalar_select %p25, 0, %s24
    %s27 = sadd.s32 1, %s18
    %s28 = scalar_select %p25, %s27, %s18
    %p29 = scmp.ge.s32.totalorder %s28, 2
    %s30 = scalar_select %p29, 0, %s28
    %s31 = ssub.s32 %s18, %s30
    %p32 = scmp.eq.s32.totalorder %s31, 0
    %s34 = sadd.s32 %s33, 1
    %s35 = scalar_select %p32, %s33, %s34
    %p38 = pneg %p32
    %p39 = scmp.eq.s32.totalorder %s11, 1
    %p40 = por %p38, %p39
    %p41 = scmp.ne.s32.totalorder %s33, %s36
    %p42 = scmp.eq.s32.totalorder %s11, 0
    %p43 = por %p41, %p42
    %p44 = scmp.ne.s32.totalorder %s33, %s36
    %p45 = scmp.eq.s32.totalorder %s16, 1
    %p46 = por %p44, %p45
    %p47 = scmp.ne.s32.totalorder %s36, %s37
    %p48 = scmp.eq.s32.totalorder %s16, 0
    %p49 = por %p47, %p48
    %p50 = scmp.ne.s32.totalorder %s36, %s37
    %p51 = scmp.eq.s32.totalorder %s17, 1
    %p52 = por %p50, %p51
    %p54 = scmp.ne.s32.totalorder %s37, %s53
    %p55 = scmp.eq.s32.totalorder %s17, 0
    %p56 = por %p54, %p55
    %s58 = sadd.s32 %s57, 1
    %p61 = scmp.eq.s32.totalorder %s11, 1
    %p62 = scmp.ne.s32.totalorder %s57, %s59
    %p63 = scmp.eq.s32.totalorder %s11, 0
    %p64 = por %p62, %p63
    %p65 = scmp.ne.s32.totalorder %s57, %s59
    %p66 = scmp.eq.s32.totalorder %s16, 1
    %p67 = por %p65, %p66
    %p68 = scmp.ne.s32.totalorder %s59, %s60
    %p69 = scmp.eq.s32.totalorder %s16, 0
    %p70 = por %p68, %p69
    %p71 = scmp.ne.s32.totalorder %s59, %s60
    %p72 = scmp.eq.s32.totalorder %s17, 1
    %p73 = por %p71, %p72
    %p75 = scmp.ne.s32.totalorder %s60, %s74
    %p76 = scmp.eq.s32.totalorder %s17, 0
    %p77 = por %p75, %p76
    %s79 = sadd.s32 %s78, 1
    %p82 = scmp.eq.s32.totalorder %s11, 1
    %p83 = scmp.ne.s32.totalorder %s78, %s80
    %p84 = scmp.eq.s32.totalorder %s11, 0
    %p85 = por %p83, %p84
    %p86 = scmp.ne.s32.totalorder %s78, %s80
    %p87 = scmp.eq.s32.totalorder %s16, 1
    %p88 = por %p86, %p87
    %p89 = scmp.ne.s32.totalorder %s80, %s81
    %p90 = scmp.eq.s32.totalorder %s16, 0
    %p91 = por %p89, %p90
    %p92 = scmp.ne.s32.totalorder %s80, %s81
    %p93 = scmp.eq.s32.totalorder %s17, 1
    %p94 = por %p92, %p93
    %p96 = scmp.ne.s32.totalorder %s81, %s95
    %p97 = scmp.eq.s32.totalorder %s17, 0
    %p98 = por %p96, %p97
    %s100 = sadd.s32 %s99, 1
    %p103 = scmp.eq.s32.totalorder %s11, 1
    %p104 = scmp.ne.s32.totalorder %s99, %s101
    %p105 = scmp.eq.s32.totalorder %s11, 0
    %p106 = por %p104, %p105
    %p107 = scmp.ne.s32.totalorder %s99, %s101
    %p108 = scmp.eq.s32.totalorder %s16, 1
    %p109 = por %p107, %p108
    %p110 = scmp.ne.s32.totalorder %s101, %s102
    %p111 = scmp.eq.s32.totalorder %s16, 0
    %p112 = por %p110, %p111
    %p113 = scmp.ne.s32.totalorder %s101, %s102
    %p114 = scmp.eq.s32.totalorder %s17, 1
    %p115 = por %p113, %p114
    %p117 = scmp.ne.s32.totalorder %s102, %s116
    %p118 = scmp.eq.s32.totalorder %s17, 0
    %p119 = por %p117, %p118
    %s120 = ssub.s32 %s19, %s26
    %p121 = scmp.eq.s32.totalorder %s120, 0
    %s123 = sadd.s32 %s122, 1
    %s124 = scalar_select %p121, %s122, %s123
    %p127 = pneg %p121
    %p128 = scmp.eq.s32.totalorder %s11, 1
    %p129 = por %p127, %p128
    %p130 = scmp.ne.s32.totalorder %s122, %s125
    %p131 = scmp.eq.s32.totalorder %s11, 0
    %p132 = por %p130, %p131
    %p133 = scmp.ne.s32.totalorder %s122, %s125
    %p134 = scmp.eq.s32.totalorder %s16, 1
    %p135 = por %p133, %p134
    %p136 = scmp.ne.s32.totalorder %s125, %s126
    %p137 = scmp.eq.s32.totalorder %s16, 0
    %p138 = por %p136, %p137
    %p139 = scmp.ne.s32.totalorder %s125, %s126
    %p140 = scmp.eq.s32.totalorder %s17, 1
    %p141 = por %p139, %p140
    %p143 = scmp.ne.s32.totalorder %s126, %s142
    %p144 = scmp.eq.s32.totalorder %s17, 0
    %p145 = por %p143, %p144
    %s146 = ssub.s32 %s18, %s30
    %s147 = ssub.s32 %s19, %s26
    %s148 = sor.u32 %s146, %s147
    %p149 = scmp.eq.s32.totalorder %s148, 0
    %s151 = sadd.s32 %s150, 1
    %s152 = scalar_select %p149, %s150, %s151
    %p155 = pneg %p149
    %p156 = scmp.eq.s32.totalorder %s11, 1
    %p157 = por %p155, %p156
    %p158 = scmp.ne.s32.totalorder %s150, %s153
    %p159 = scmp.eq.s32.totalorder %s11, 0
    %p160 = por %p158, %p159
    %p161 = scmp.ne.s32.totalorder %s150, %s153
    %p162 = scmp.eq.s32.totalorder %s16, 1
    %p163 = por %p161, %p162
    %p164 = scmp.ne.s32.totalorder %s153, %s154
    %p165 = scmp.eq.s32.totalorder %s16, 0
    %p166 = por %p164, %p165
    %p167 = scmp.ne.s32.totalorder %s153, %s154
    %p168 = scmp.eq.s32.totalorder %s17, 1
    %p169 = por %p167, %p168
    %p171 = scmp.ne.s32.totalorder %s154, %s170
    %p172 = scmp.eq.s32.totalorder %s17, 0
    %p173 = por %p171, %p172
    %p174 = scmp.le.s32.totalorder 1, %s11
    %p175 = scmp.lt.s32.totalorder %s11, 3
    %p176 = pnand %p174, %p175
    %p177 = pneg %p176
    // Predicated region
    $region9: #{tpu_custom_call.1} parent=5 // pred_check
      _
    $region10: #{tpu_custom_call.1} parent=5 // pred_check_branch
      %179 = sbr.rel (%p176) target = $region12
    $region11: #{tpu_custom_call.1} parent=5 // pred_region
      %s180 = ssub.s32 %s11, 1
      // Predicated region
      $region13: #{tpu_custom_call.1} parent=11 // pred_check
        %p181 = pneg %p70
      $region14: #{tpu_custom_call.1} parent=11 // pred_check_branch
        %183 = sbr.rel (%p181) target = $region16
      $region15: #{tpu_custom_call.1} parent=11 // pred_region
        _
      $region16: #{tpu_custom_call.1} parent=11 // pred_fallthru
        _
      // Predicated region
      $region17: #{tpu_custom_call.1} parent=11 // pred_check
        %p184 = pneg %p91
      $region18: #{tpu_custom_call.1} parent=11 // pred_check_branch
        %186 = sbr.rel (%p184) target = $region20
      $region19: #{tpu_custom_call.1} parent=11 // pred_region
        _
      $region20: #{tpu_custom_call.1} parent=11 // pred_fallthru
        _
      // Predicated region
      $region21: #{tpu_custom_call.1} parent=11 // pred_check
        %p187 = pneg %p112
      $region22: #{tpu_custom_call.1} parent=11 // pred_check_branch
        %189 = sbr.rel (%p187) target = $region24
      $region23: #{tpu_custom_call.1} parent=11 // pred_region
        _
      $region24: #{tpu_custom_call.1} parent=11 // pred_fallthru
        _
      // Predicated region
      $region25: #{tpu_custom_call.1} parent=11 // pred_check
        %p190 = pneg %p138
      $region26: #{tpu_custom_call.1} parent=11 // pred_check_branch
        %192 = sbr.rel (%p190) target = $region28
      $region27: #{tpu_custom_call.1} parent=11 // pred_region
        %p193 = scmp.lt.s32.totalorder %s21, 0
        %s194 = scalar_select %p193, %s21, 0
        %s195 = smul.addr %s194, 4
        %s196 = scalar_lea.vmem %s4, %s195
      $region28: #{tpu_custom_call.1} parent=11 // pred_fallthru
        _
    $region12: #{tpu_custom_call.1} parent=5 // pred_fallthru
      _
    %p197 = scmp.lt.s32.totalorder %s11, 2
    // Predicated region
    $region29: #{tpu_custom_call.1} parent=5 // pred_check
      %p198 = pneg %p197
    $region30: #{tpu_custom_call.1} parent=5 // pred_check_branch
      %200 = sbr.rel (%p198) target = $region32
    $region31: #{tpu_custom_call.1} parent=5 // pred_region
      // Predicated region
      $region33: #{tpu_custom_call.1} parent=31 // pred_check
        %p201 = pneg %p43
      $region34: #{tpu_custom_call.1} parent=31 // pred_check_branch
        %203 = sbr.rel (%p201) target = $region36
      $region35: #{tpu_custom_call.1} parent=31 // pred_region
        %p204 = scmp.lt.s32.totalorder %s18, 1
        %s205 = scalar_select %p204, %s18, 1
        %s206 = smul.addr %s205, 72
        %s207 = smul.addr %s206, 8
        %s208 = scalar_lea.vmem %s0, %s207
      $region36: #{tpu_custom_call.1} parent=31 // pred_fallthru
        _
    $region32: #{tpu_custom_call.1} parent=5 // pred_fallthru
      _
    %p209 = scmp.le.s32.totalorder 1, %s11
    %p210 = scmp.lt.s32.totalorder %s11, 3
    %p211 = pnand %p209, %p210
    %p212 = pneg %p211
    // Predicated region
    $region37: #{tpu_custom_call.1} parent=5 // pred_check
      _
    $region38: #{tpu_custom_call.1} parent=5 // pred_check_branch
      %214 = sbr.rel (%p211) target = $region40
    $region39: #{tpu_custom_call.1} parent=5 // pred_region
      %s215 = ssub.s32 %s11, 1
      %p216 = scmp.lt.s32.totalorder %s20, 1
      %s217 = scalar_select %p216, %s20, 1
      %s218 = smul.addr %s217, 72
      %s219 = smul.addr %s218, 8
      %s220 = scalar_lea.vmem %s0, %s219
      %p221 = pneg %p49
      %p222 = pneg %p46
      %p223 = pneg %p70
      %p224 = pneg %p67
      %p225 = pneg %p91
      %p226 = pneg %p88
      %p227 = pneg %p112
      %p228 = pneg %p109
      %p229 = scmp.lt.s32.totalorder %s21, 0
      %s230 = scalar_select %p229, %s21, 0
      %s231 = smul.addr %s230, 4
      %s232 = scalar_lea.vmem %s4, %s231
      %p233 = pneg %p138
      %p234 = pneg %p135
      %p235 = pneg %p166
      %p236 = pneg %p163
      %p237 = scmp.lt.s32.totalorder %s20, 1
      %s238 = scalar_select %p237, %s20, 1
      %p239 = scmp.lt.s32.totalorder %s21, 0
      %s240 = scalar_select %p239, %s21, 0
      %s241 = smul.addr %s238, 8
      %s242 = sadd.s32 %s240, %s241
      %s243 = smul.addr %s242, 8
      %s244 = scalar_lea.vmem %s5, %s243
      %p245 = scmp.lt.s32.totalorder %s20, 1
      %s246 = scalar_select %p245, %s20, 1
      %s247 = smul.addr %s246, 72
      %s248 = smul.addr %s247, 8
      %s249 = scalar_lea.vmem %s0, %s248
      %p250 = scmp.lt.s32.totalorder %s21, 0
      %s251 = scalar_select %p250, %s21, 0
      %s252 = smul.addr %s251, 4
      %s253 = scalar_lea.vmem %s4, %s252
      %p254 = scmp.lt.s32.totalorder %s20, 1
      %s255 = scalar_select %p254, %s20, 1
      %p256 = scmp.lt.s32.totalorder %s21, 0
      %s257 = scalar_select %p256, %s21, 0
      %s258 = smul.addr %s255, 8
      %s259 = sadd.s32 %s257, %s258
      %s260 = smul.addr %s259, 8
      %s261 = scalar_lea.vmem %s5, %s260
      %v262 = vld [vmem:[%s2] sm:$0x1]
      %v263 = vld [vmem:[%s3] sm:$0x1]
      %v264 = vld [vmem:[%s249] sm:$0xff]
      %v265 = vld [vmem:[%s249 + $0x8] sm:$0x1]
      %v266 = vld [vmem:[%s249 + $0x10] sm:$0xff]
      %v267 = vld [vmem:[%s249 + $0x18] sm:$0x1]
      %v268 = vld [vmem:[%s249 + $0x20] sm:$0xff]
      %v269 = vld [vmem:[%s249 + $0x28] sm:$0x1]
      %v270 = vld [vmem:[%s249 + $0x30] sm:$0xff]
      %v271 = vld [vmem:[%s249 + $0x38] sm:$0x1]
      %v272 = vld [vmem:[%s249 + $0x40] sm:$0xff]
      %v273 = vld [vmem:[%s249 + $0x48] sm:$0x1]
      %v274 = vld [vmem:[%s249 + $0x50] sm:$0xff]
      %v275 = vld [vmem:[%s249 + $0x58] sm:$0x1]
      %v276 = vld [vmem:[%s249 + $0x60] sm:$0xff]
      %v277 = vld [vmem:[%s249 + $0x68] sm:$0x1]
      %v278 = vld [vmem:[%s249 + $0x70] sm:$0xff]
      %v279 = vld [vmem:[%s249 + $0x78] sm:$0x1]
      %v280 = vld [vmem:[%s249 + $0x80] sm:$0xff]
      %v281 = vld [vmem:[%s249 + $0x88] sm:$0x1]
      %v283 = vlaneseq
      %v284 = vshrl.u32 %v283, 7
      %v285 = vsub.s32 0, %v284
      %v286 = vrot.slane %v262, %v285
      %v288 = vmul.f32 %v264, %v286
      %v289 = vmul.f32 %v265, %v286
      %v290 = vmul.f32 %v266, %v286
      %v291 = vmul.f32 %v267, %v286
      %v292 = vmul.f32 %v268, %v286
      %v293 = vmul.f32 %v269, %v286
      %v294 = vmul.f32 %v270, %v286
      %v295 = vmul.f32 %v271, %v286
      %v296 = vmul.f32 %v272, %v286
      %v297 = vmul.f32 %v273, %v286
      %v298 = vmul.f32 %v274, %v286
      %v299 = vmul.f32 %v275, %v286
      %v300 = vmul.f32 %v276, %v286
      %v301 = vmul.f32 %v277, %v286
      %v302 = vmul.f32 %v278, %v286
      %v303 = vmul.f32 %v279, %v286
      %v304 = vmul.f32 %v280, %v286
      %v305 = vmul.f32 %v281, %v286
      %v307 = vlaneseq
      %v308 = vshrl.u32 %v307, 7
      %v309 = vsub.s32 0, %v308
      %v310 = vrot.slane %v263, %v309
      %v312 = vadd.f32 %v288, %v310
      %v313 = vadd.f32 %v289, %v310
      %v314 = vadd.f32 %v290, %v310
      %v315 = vadd.f32 %v291, %v310
      %v316 = vadd.f32 %v292, %v310
      %v317 = vadd.f32 %v293, %v310
      %v318 = vadd.f32 %v294, %v310
      %v319 = vadd.f32 %v295, %v310
      %v320 = vadd.f32 %v296, %v310
      %v321 = vadd.f32 %v297, %v310
      %v322 = vadd.f32 %v298, %v310
      %v323 = vadd.f32 %v299, %v310
      %v324 = vadd.f32 %v300, %v310
      %v325 = vadd.f32 %v301, %v310
      %v326 = vadd.f32 %v302, %v310
      %v327 = vadd.f32 %v303, %v310
      %v328 = vadd.f32 %v304, %v310
      %v329 = vadd.f32 %v305, %v310
      %v330 = vmax.f32 %v312, 0.0
      %v331 = vmax.f32 %v313, 0.0
      %v332 = vmax.f32 %v314, 0.0
      %v333 = vmax.f32 %v315, 0.0
      %v334 = vmax.f32 %v316, 0.0
      %v335 = vmax.f32 %v317, 0.0
      %v336 = vmax.f32 %v318, 0.0
      %v337 = vmax.f32 %v319, 0.0
      %v338 = vmax.f32 %v320, 0.0
      %v339 = vmax.f32 %v321, 0.0
      %v340 = vmax.f32 %v322, 0.0
      %v341 = vmax.f32 %v323, 0.0
      %v342 = vmax.f32 %v324, 0.0
      %v343 = vmax.f32 %v325, 0.0
      %v344 = vmax.f32 %v326, 0.0
      %v345 = vmax.f32 %v327, 0.0
      %v346 = vmax.f32 %v328, 0.0
      %v347 = vmax.f32 %v329, 0.0
      %v348 = vld [vmem:[%s1] sm:$0xff]
      %v349 = vld [vmem:[%s1 + $0x8] sm:$0x1]
      %v350 = vld [vmem:[%s1 + $0x10] sm:$0xff]
      %v351 = vld [vmem:[%s1 + $0x18] sm:$0x1]
      %v352 = vld [vmem:[%s1 + $0x20] sm:$0xff]
      %v353 = vld [vmem:[%s1 + $0x28] sm:$0x1]
      %v354 = vld [vmem:[%s1 + $0x30] sm:$0xff]
      %v355 = vld [vmem:[%s1 + $0x38] sm:$0x1]
      %v356 = vld [vmem:[%s1 + $0x40] sm:$0xff]
      %v357 = vld [vmem:[%s1 + $0x48] sm:$0x1]
      %v358 = vld [vmem:[%s1 + $0x50] sm:$0xff]
      %v359 = vld [vmem:[%s1 + $0x58] sm:$0x1]
      %v360 = vld [vmem:[%s1 + $0x60] sm:$0xff]
      %v361 = vld [vmem:[%s1 + $0x68] sm:$0x1]
      %v362 = vld [vmem:[%s1 + $0x70] sm:$0xff]
      %v363 = vld [vmem:[%s1 + $0x78] sm:$0x1]
      %v364 = vld [vmem:[%s1 + $0x80] sm:$0xff]
      %v365 = vld [vmem:[%s1 + $0x88] sm:$0x1]
      %367 = vset.pattern.permute.xlu0 0
      %368 = vperm.xlu0 %367, %v348
      %v369 = vpop.permute.xlu0 %368
      %372 = vset.pattern.permute.xlu0 0
      %373 = vperm.xlu0 %372, %v349
      %v374 = vpop.permute.xlu0 %373
      %377 = vset.pattern.permute.xlu0 0
      %378 = vperm.xlu0 %377, %v350
      %v379 = vpop.permute.xlu0 %378
      %382 = vset.pattern.permute.xlu0 0
      %383 = vperm.xlu0 %382, %v351
      %v384 = vpop.permute.xlu0 %383
      %387 = vset.pattern.permute.xlu0 0
      %388 = vperm.xlu0 %387, %v352
      %v389 = vpop.permute.xlu0 %388
      %392 = vset.pattern.permute.xlu0 0
      %393 = vperm.xlu0 %392, %v353
      %v394 = vpop.permute.xlu0 %393
      %397 = vset.pattern.permute.xlu0 0
      %398 = vperm.xlu0 %397, %v354
      %v399 = vpop.permute.xlu0 %398
      %402 = vset.pattern.permute.xlu0 0
      %403 = vperm.xlu0 %402, %v355
      %v404 = vpop.permute.xlu0 %403
      %407 = vset.pattern.permute.xlu0 0
      %408 = vperm.xlu0 %407, %v356
      %v409 = vpop.permute.xlu0 %408
      %412 = vset.pattern.permute.xlu0 0
      %413 = vperm.xlu0 %412, %v357
      %v414 = vpop.permute.xlu0 %413
      %417 = vset.pattern.permute.xlu0 0
      %418 = vperm.xlu0 %417, %v358
      %v419 = vpop.permute.xlu0 %418
      %422 = vset.pattern.permute.xlu0 0
      %423 = vperm.xlu0 %422, %v359
      %v424 = vpop.permute.xlu0 %423
      %427 = vset.pattern.permute.xlu0 0
      %428 = vperm.xlu0 %427, %v360
      %v429 = vpop.permute.xlu0 %428
      %432 = vset.pattern.permute.xlu0 0
      %433 = vperm.xlu0 %432, %v361
      %v434 = vpop.permute.xlu0 %433
      %437 = vset.pattern.permute.xlu0 0
      %438 = vperm.xlu0 %437, %v362
      %v439 = vpop.permute.xlu0 %438
      %442 = vset.pattern.permute.xlu0 0
      %443 = vperm.xlu0 %442, %v363
      %v444 = vpop.permute.xlu0 %443
      %447 = vset.pattern.permute.xlu0 0
      %448 = vperm.xlu0 %447, %v364
      %v449 = vpop.permute.xlu0 %448
      %452 = vset.pattern.permute.xlu0 0
      %453 = vperm.xlu0 %452, %v365
      %v454 = vpop.permute.xlu0 %453
      %v456 = vmul.f32 %v330, %v369
      %v457 = vmul.f32 %v331, %v374
      %v458 = vmul.f32 %v332, %v379
      %v459 = vmul.f32 %v333, %v384
      %v460 = vmul.f32 %v334, %v389
      %v461 = vmul.f32 %v335, %v394
      %v462 = vmul.f32 %v336, %v399
      %v463 = vmul.f32 %v337, %v404
      %v464 = vmul.f32 %v338, %v409
      %v465 = vmul.f32 %v339, %v414
      %v466 = vmul.f32 %v340, %v419
      %v467 = vmul.f32 %v341, %v424
      %v468 = vmul.f32 %v342, %v429
      %v469 = vmul.f32 %v343, %v434
      %v470 = vmul.f32 %v344, %v439
      %v471 = vmul.f32 %v345, %v444
      %v472 = vmul.f32 %v346, %v449
      %v473 = vmul.f32 %v347, %v454
      %s474 = scalar_lea.vmem %s249, 144
      %v475 = vld [vmem:[%s474] sm:$0xff]
      %v476 = vld [vmem:[%s474 + $0x10] sm:$0xff]
      %v477 = vld [vmem:[%s474 + $0x20] sm:$0xff]
      %v478 = vld [vmem:[%s474 + $0x30] sm:$0xff]
      %v479 = vld [vmem:[%s474 + $0x40] sm:$0xff]
      %v480 = vld [vmem:[%s474 + $0x50] sm:$0xff]
      %v481 = vld [vmem:[%s474 + $0x60] sm:$0xff]
      %v482 = vld [vmem:[%s474 + $0x70] sm:$0xff]
      %v483 = vld [vmem:[%s474 + $0x80] sm:$0xff]
      %v484 = vmul.f32 %v475, %v286
      %v485 = vmul.f32 %v476, %v286
      %v486 = vmul.f32 %v477, %v286
      %v487 = vmul.f32 %v478, %v286
      %v488 = vmul.f32 %v479, %v286
      %v489 = vmul.f32 %v480, %v286
      %v490 = vmul.f32 %v481, %v286
      %v491 = vmul.f32 %v482, %v286
      %v492 = vmul.f32 %v483, %v286
      %v493 = vadd.f32 %v484, %v310
      %v494 = vadd.f32 %v485, %v310
      %v495 = vadd.f32 %v486, %v310
      %v496 = vadd.f32 %v487, %v310
      %v497 = vadd.f32 %v488, %v310
      %v498 = vadd.f32 %v489, %v310
      %v499 = vadd.f32 %v490, %v310
      %v500 = vadd.f32 %v491, %v310
      %v501 = vadd.f32 %v492, %v310
      %v502 = vmax.f32 %v493, 0.0
      %v503 = vmax.f32 %v494, 0.0
      %v504 = vmax.f32 %v495, 0.0
      %v505 = vmax.f32 %v496, 0.0
      %v506 = vmax.f32 %v497, 0.0
      %v507 = vmax.f32 %v498, 0.0
      %v508 = vmax.f32 %v499, 0.0
      %v509 = vmax.f32 %v500, 0.0
      %v510 = vmax.f32 %v501, 0.0
      %s511 = scalar_lea.vmem %s1, 144
      %v512 = vld [vmem:[%s511] sm:$0xff]
      %v513 = vld [vmem:[%s511 + $0x10] sm:$0xff]
      %v514 = vld [vmem:[%s511 + $0x20] sm:$0xff]
      %v515 = vld [vmem:[%s511 + $0x30] sm:$0xff]
      %v516 = vld [vmem:[%s511 + $0x40] sm:$0xff]
      %v517 = vld [vmem:[%s511 + $0x50] sm:$0xff]
      %v518 = vld [vmem:[%s511 + $0x60] sm:$0xff]
      %v519 = vld [vmem:[%s511 + $0x70] sm:$0xff]
      %v520 = vld [vmem:[%s511 + $0x80] sm:$0xff]
      %522 = vset.pattern.permute.xlu0 0
      %523 = vperm.xlu0 %522, %v512
      %v524 = vpop.permute.xlu0 %523
      %527 = vset.pattern.permute.xlu0 0
      %528 = vperm.xlu0 %527, %v513
      %v529 = vpop.permute.xlu0 %528
      %532 = vset.pattern.permute.xlu0 0
      %533 = vperm.xlu0 %532, %v514
      %v534 = vpop.permute.xlu0 %533
      %537 = vset.pattern.permute.xlu0 0
      %538 = vperm.xlu0 %537, %v515
      %v539 = vpop.permute.xlu0 %538
      %542 = vset.pattern.permute.xlu0 0
      %543 = vperm.xlu0 %542, %v516
      %v544 = vpop.permute.xlu0 %543
      %547 = vset.pattern.permute.xlu0 0
      %548 = vperm.xlu0 %547, %v517
      %v549 = vpop.permute.xlu0 %548
      %552 = vset.pattern.permute.xlu0 0
      %553 = vperm.xlu0 %552, %v518
      %v554 = vpop.permute.xlu0 %553
      %557 = vset.pattern.permute.xlu0 0
      %558 = vperm.xlu0 %557, %v519
      %v559 = vpop.permute.xlu0 %558
      %562 = vset.pattern.permute.xlu0 0
      %563 = vperm.xlu0 %562, %v520
      %v564 = vpop.permute.xlu0 %563
      %v566 = vmul.f32 %v502, %v524
      %v567 = vmul.f32 %v503, %v529
      %v568 = vmul.f32 %v504, %v534
      %v569 = vmul.f32 %v505, %v539
      %v570 = vmul.f32 %v506, %v544
      %v571 = vmul.f32 %v507, %v549
      %v572 = vmul.f32 %v508, %v554
      %v573 = vmul.f32 %v509, %v559
      %v574 = vmul.f32 %v510, %v564
      %s575 = scalar_lea.vmem %s249, 288
      %v576 = vld [vmem:[%s575] sm:$0xff]
      %v577 = vld [vmem:[%s575 + $0x8] sm:$0x1]
      %v578 = vld [vmem:[%s575 + $0x10] sm:$0xff]
      %v579 = vld [vmem:[%s575 + $0x18] sm:$0x1]
      %v580 = vld [vmem:[%s575 + $0x20] sm:$0xff]
      %v581 = vld [vmem:[%s575 + $0x28] sm:$0x1]
      %v582 = vld [vmem:[%s575 + $0x30] sm:$0xff]
      %v583 = vld [vmem:[%s575 + $0x38] sm:$0x1]
      %v584 = vld [vmem:[%s575 + $0x40] sm:$0xff]
      %v585 = vld [vmem:[%s575 + $0x48] sm:$0x1]
      %v586 = vld [vmem:[%s575 + $0x50] sm:$0xff]
      %v587 = vld [vmem:[%s575 + $0x58] sm:$0x1]
      %v588 = vld [vmem:[%s575 + $0x60] sm:$0xff]
      %v589 = vld [vmem:[%s575 + $0x68] sm:$0x1]
      %v590 = vld [vmem:[%s575 + $0x70] sm:$0xff]
      %v591 = vld [vmem:[%s575 + $0x78] sm:$0x1]
      %v592 = vmul.f32 %v576, %v286
      %v593 = vmul.f32 %v577, %v286
      %v594 = vmul.f32 %v578, %v286
      %v595 = vmul.f32 %v579, %v286
      %v596 = vmul.f32 %v580, %v286
      %v597 = vmul.f32 %v581, %v286
      %v598 = vmul.f32 %v582, %v286
      %v599 = vmul.f32 %v583, %v286
      %v600 = vmul.f32 %v584, %v286
      %v601 = vmul.f32 %v585, %v286
      %v602 = vmul.f32 %v586, %v286
      %v603 = vmul.f32 %v587, %v286
      %v604 = vmul.f32 %v588, %v286
      %v605 = vmul.f32 %v589, %v286
      %v606 = vmul.f32 %v590, %v286
      %v607 = vmul.f32 %v591, %v286
      %v608 = vadd.f32 %v592, %v310
      %v609 = vadd.f32 %v593, %v310
      %v610 = vadd.f32 %v594, %v310
      %v611 = vadd.f32 %v595, %v310
      %v612 = vadd.f32 %v596, %v310
      %v613 = vadd.f32 %v597, %v310
      %v614 = vadd.f32 %v598, %v310
      %v615 = vadd.f32 %v599, %v310
      %v616 = vadd.f32 %v600, %v310
      %v617 = vadd.f32 %v601, %v310
      %v618 = vadd.f32 %v602, %v310
      %v619 = vadd.f32 %v603, %v310
      %v620 = vadd.f32 %v604, %v310
      %v621 = vadd.f32 %v605, %v310
      %v622 = vadd.f32 %v606, %v310
      %v623 = vadd.f32 %v607, %v310
      %v624 = vmax.f32 %v608, 0.0
      %v625 = vmax.f32 %v609, 0.0
      %v626 = vmax.f32 %v610, 0.0
      %v627 = vmax.f32 %v611, 0.0
      %v628 = vmax.f32 %v612, 0.0
      %v629 = vmax.f32 %v613, 0.0
      %v630 = vmax.f32 %v614, 0.0
      %v631 = vmax.f32 %v615, 0.0
      %v632 = vmax.f32 %v616, 0.0
      %v633 = vmax.f32 %v617, 0.0
      %v634 = vmax.f32 %v618, 0.0
      %v635 = vmax.f32 %v619, 0.0
      %v636 = vmax.f32 %v620, 0.0
      %v637 = vmax.f32 %v621, 0.0
      %v638 = vmax.f32 %v622, 0.0
      %v639 = vmax.f32 %v623, 0.0
      %s640 = scalar_lea.vmem %s1, 288
      %v641 = vld [vmem:[%s640] sm:$0xff]
      %v642 = vld [vmem:[%s640 + $0x8] sm:$0x1]
      %v643 = vld [vmem:[%s640 + $0x10] sm:$0xff]
      %v644 = vld [vmem:[%s640 + $0x18] sm:$0x1]
      %v645 = vld [vmem:[%s640 + $0x20] sm:$0xff]
      %v646 = vld [vmem:[%s640 + $0x28] sm:$0x1]
      %v647 = vld [vmem:[%s640 + $0x30] sm:$0xff]
      %v648 = vld [vmem:[%s640 + $0x38] sm:$0x1]
      %v649 = vld [vmem:[%s640 + $0x40] sm:$0xff]
      %v650 = vld [vmem:[%s640 + $0x48] sm:$0x1]
      %v651 = vld [vmem:[%s640 + $0x50] sm:$0xff]
      %v652 = vld [vmem:[%s640 + $0x58] sm:$0x1]
      %v653 = vld [vmem:[%s640 + $0x60] sm:$0xff]
      %v654 = vld [vmem:[%s640 + $0x68] sm:$0x1]
      %v655 = vld [vmem:[%s640 + $0x70] sm:$0xff]
      %v656 = vld [vmem:[%s640 + $0x78] sm:$0x1]
      %658 = vset.pattern.permute.xlu0 0
      %659 = vperm.xlu0 %658, %v641
      %v660 = vpop.permute.xlu0 %659
      %663 = vset.pattern.permute.xlu0 0
      %664 = vperm.xlu0 %663, %v642
      %v665 = vpop.permute.xlu0 %664
      %668 = vset.pattern.permute.xlu0 0
      %669 = vperm.xlu0 %668, %v643
      %v670 = vpop.permute.xlu0 %669
      %673 = vset.pattern.permute.xlu0 0
      %674 = vperm.xlu0 %673, %v644
      %v675 = vpop.permute.xlu0 %674
      %678 = vset.pattern.permute.xlu0 0
      %679 = vperm.xlu0 %678, %v645
      %v680 = vpop.permute.xlu0 %679
      %683 = vset.pattern.permute.xlu0 0
      %684 = vperm.xlu0 %683, %v646
      %v685 = vpop.permute.xlu0 %684
      %688 = vset.pattern.permute.xlu0 0
      %689 = vperm.xlu0 %688, %v647
      %v690 = vpop.permute.xlu0 %689
      %693 = vset.pattern.permute.xlu0 0
      %694 = vperm.xlu0 %693, %v648
      %v695 = vpop.permute.xlu0 %694
      %698 = vset.pattern.permute.xlu0 0
      %699 = vperm.xlu0 %698, %v649
      %v700 = vpop.permute.xlu0 %699
      %703 = vset.pattern.permute.xlu0 0
      %704 = vperm.xlu0 %703, %v650
      %v705 = vpop.permute.xlu0 %704
      %708 = vset.pattern.permute.xlu0 0
      %709 = vperm.xlu0 %708, %v651
      %v710 = vpop.permute.xlu0 %709
      %713 = vset.pattern.permute.xlu0 0
      %714 = vperm.xlu0 %713, %v652
      %v715 = vpop.permute.xlu0 %714
      %718 = vset.pattern.permute.xlu0 0
      %719 = vperm.xlu0 %718, %v653
      %v720 = vpop.permute.xlu0 %719
      %723 = vset.pattern.permute.xlu0 0
      %724 = vperm.xlu0 %723, %v654
      %v725 = vpop.permute.xlu0 %724
      %728 = vset.pattern.permute.xlu0 0
      %729 = vperm.xlu0 %728, %v655
      %v730 = vpop.permute.xlu0 %729
      %733 = vset.pattern.permute.xlu0 0
      %734 = vperm.xlu0 %733, %v656
      %v735 = vpop.permute.xlu0 %734
      %v737 = vmul.f32 %v624, %v660
      %v738 = vmul.f32 %v625, %v665
      %v739 = vmul.f32 %v626, %v670
      %v740 = vmul.f32 %v627, %v675
      %v741 = vmul.f32 %v628, %v680
      %v742 = vmul.f32 %v629, %v685
      %v743 = vmul.f32 %v630, %v690
      %v744 = vmul.f32 %v631, %v695
      %v745 = vmul.f32 %v632, %v700
      %v746 = vmul.f32 %v633, %v705
      %v747 = vmul.f32 %v634, %v710
      %v748 = vmul.f32 %v635, %v715
      %v749 = vmul.f32 %v636, %v720
      %v750 = vmul.f32 %v637, %v725
      %v751 = vmul.f32 %v638, %v730
      %v752 = vmul.f32 %v639, %v735
      %s753 = scalar_lea.vmem %s249, 432
      %v754 = vld [vmem:[%s753] sm:$0xff]
      %v755 = vld [vmem:[%s753 + $0x10] sm:$0xff]
      %v756 = vld [vmem:[%s753 + $0x20] sm:$0xff]
      %v757 = vld [vmem:[%s753 + $0x30] sm:$0xff]
      %v758 = vld [vmem:[%s753 + $0x40] sm:$0xff]
      %v759 = vld [vmem:[%s753 + $0x50] sm:$0xff]
      %v760 = vld [vmem:[%s753 + $0x60] sm:$0xff]
      %v761 = vld [vmem:[%s753 + $0x70] sm:$0xff]
      %v762 = vmul.f32 %v754, %v286
      %v763 = vmul.f32 %v755, %v286
      %v764 = vmul.f32 %v756, %v286
      %v765 = vmul.f32 %v757, %v286
      %v766 = vmul.f32 %v758, %v286
      %v767 = vmul.f32 %v759, %v286
      %v768 = vmul.f32 %v760, %v286
      %v769 = vmul.f32 %v761, %v286
      %v770 = vadd.f32 %v762, %v310
      %v771 = vadd.f32 %v763, %v310
      %v772 = vadd.f32 %v764, %v310
      %v773 = vadd.f32 %v765, %v310
      %v774 = vadd.f32 %v766, %v310
      %v775 = vadd.f32 %v767, %v310
      %v776 = vadd.f32 %v768, %v310
      %v777 = vadd.f32 %v769, %v310
      %v778 = vmax.f32 %v770, 0.0
      %v779 = vmax.f32 %v771, 0.0
      %v780 = vmax.f32 %v772, 0.0
      %v781 = vmax.f32 %v773, 0.0
      %v782 = vmax.f32 %v774, 0.0
      %v783 = vmax.f32 %v775, 0.0
      %v784 = vmax.f32 %v776, 0.0
      %v785 = vmax.f32 %v777, 0.0
      %s786 = scalar_lea.vmem %s1, 432
      %v787 = vld [vmem:[%s786] sm:$0xff]
      %v788 = vld [vmem:[%s786 + $0x10] sm:$0xff]
      %v789 = vld [vmem:[%s786 + $0x20] sm:$0xff]
      %v790 = vld [vmem:[%s786 + $0x30] sm:$0xff]
      %v791 = vld [vmem:[%s786 + $0x40] sm:$0xff]
      %v792 = vld [vmem:[%s786 + $0x50] sm:$0xff]
      %v793 = vld [vmem:[%s786 + $0x60] sm:$0xff]
      %v794 = vld [vmem:[%s786 + $0x70] sm:$0xff]
      %796 = vset.pattern.permute.xlu0 0
      %797 = vperm.xlu0 %796, %v787
      %v798 = vpop.permute.xlu0 %797
      %801 = vset.pattern.permute.xlu0 0
      %802 = vperm.xlu0 %801, %v788
      %v803 = vpop.permute.xlu0 %802
      %806 = vset.pattern.permute.xlu0 0
      %807 = vperm.xlu0 %806, %v789
      %v808 = vpop.permute.xlu0 %807
      %811 = vset.pattern.permute.xlu0 0
      %812 = vperm.xlu0 %811, %v790
      %v813 = vpop.permute.xlu0 %812
      %816 = vset.pattern.permute.xlu0 0
      %817 = vperm.xlu0 %816, %v791
      %v818 = vpop.permute.xlu0 %817
      %821 = vset.pattern.permute.xlu0 0
      %822 = vperm.xlu0 %821, %v792
      %v823 = vpop.permute.xlu0 %822
      %826 = vset.pattern.permute.xlu0 0
      %827 = vperm.xlu0 %826, %v793
      %v828 = vpop.permute.xlu0 %827
      %831 = vset.pattern.permute.xlu0 0
      %832 = vperm.xlu0 %831, %v794
      %v833 = vpop.permute.xlu0 %832
      %v835 = vmul.f32 %v778, %v798
      %v836 = vmul.f32 %v779, %v803
      %v837 = vmul.f32 %v780, %v808
      %v838 = vmul.f32 %v781, %v813
      %v839 = vmul.f32 %v782, %v818
      %v840 = vmul.f32 %v783, %v823
      %v841 = vmul.f32 %v784, %v828
      %v842 = vmul.f32 %v785, %v833
      %v843 = vld [vmem:[%s253] sm:$0xf]
      %s844 = scalar_lea.vmem %s253, 4
      %v845 = vld [vmem:[%s844] sm:$0xf]
      %vm846 = vcmask 31744
      %v848 = vsel %vm846, %v566, 0
      %v851 = vsel %vm846, %v567, 0
      %v854 = vsel %vm846, %v568, 0
      %v857 = vsel %vm846, %v569, 0
      %v860 = vsel %vm846, %v570, 0
      %v863 = vsel %vm846, %v571, 0
      %v866 = vsel %vm846, %v572, 0
      %v869 = vsel %vm846, %v573, 0
      %vm871 = vcmask 1043456
      %v873 = vsel %vm871, %v845, 0
      %875 = vmatprep.subr.mxu0 0.0
      %876 = vmatpush1.msra.mxu0 %v873
      %877 = vmatprep.subr.mxu0 0.0
      %878 = vmatpush1.msra.mxu0 0.0
      %879 = vmatprep.subr.mxu0 0.0
      %880 = vmatpush1.msra.mxu0 0.0
      %881 = vmatprep.subr.mxu0 0.0
      %882 = vmatpush1.msra.mxu0 0.0
      %883 = vmatprep.subr.mxu0 0.0
      %884 = vmatpush1.msra.mxu0 0.0
      %885 = vmatprep.subr.mxu0 0.0
      %886 = vmatpush1.msra.mxu0 0.0
      %887 = vmatprep.subr.mxu0 0.0
      %888 = vmatpush1.msra.mxu0 0.0
      %889 = vmatprep.subr.mxu0 0.0
      %890 = vmatpush1.msra.mxu0 0.0
      %891 = vmatprep.subr.mxu0 0.0
      %892 = vmatpush1.msra.mxu0 0.0
      %893 = vmatprep.subr.mxu0 0.0
      %894 = vmatpush1.msra.mxu0 0.0
      %895 = vmatprep.subr.mxu0 0.0
      %896 = vmatpush1.msra.mxu0 0.0
      %897 = vmatprep.subr.mxu0 0.0
      %898 = vmatpush1.msra.mxu0 0.0
      %899 = vmatprep.subr.mxu0 0.0
      %900 = vmatpush1.msra.mxu0 0.0
      %901 = vmatprep.subr.mxu0 0.0
      %902 = vmatpush1.msra.mxu0 0.0
      %903 = vmatprep.subr.mxu0 0.0
      %904 = vmatpush1.msra.mxu0 0.0
      %905 = vmatprep.subr.mxu0 0.0
      %906 = vmatpush1.msra.mxu0 0.0
      %907 = vmatprep.subr.mxu0 0.0
      %908 = vmatpush1.msra.mxu0 0.0
      %909 = vmatprep.subr.mxu0 0.0
      %910 = vmatpush1.msra.mxu0 0.0
      %911 = vmatprep.subr.mxu0 0.0
      %912 = vmatpush1.msra.mxu0 0.0
      %913 = vmatprep.subr.mxu0 0.0
      %914 = vmatpush1.msra.mxu0 0.0
      %915 = vmatprep.subr.mxu0 0.0
      %916 = vmatpush1.msra.mxu0 0.0
      %917 = vmatprep.subr.mxu0 0.0
      %918 = vmatpush1.msra.mxu0 0.0
      %919 = vmatprep.subr.mxu0 0.0
      %920 = vmatpush1.msra.mxu0 0.0
      %921 = vmatprep.subr.mxu0 0.0
      %922 = vmatpush1.msra.mxu0 0.0
      %923 = vmatprep.subr.mxu0 0.0
      %924 = vmatpush1.msra.mxu0 0.0
      %925 = vmatprep.subr.mxu0 0.0
      %926 = vmatpush1.msra.mxu0 0.0
      %927 = vmatprep.subr.mxu0 0.0
      %928 = vmatpush1.msra.mxu0 0.0
      %929 = vmatprep.subr.mxu0 0.0
      %930 = vmatpush1.msra.mxu0 0.0
      %931 = vmatprep.subr.mxu0 0.0
      %932 = vmatpush1.msra.mxu0 0.0
      %933 = vmatprep.subr.mxu0 0.0
      %934 = vmatpush1.msra.mxu0 0.0
      %935 = vmatprep.subr.mxu0 0.0
      %936 = vmatpush1.msra.mxu0 0.0
      %937 = vmatprep.subr.mxu0 0.0
      %938 = vmatpush1.msra.mxu0 0.0
      %939 = vmatprep.mubr.f32.mxu0 0.0
      %940 = vmatmul.mubr.f32.gmra.mrb[0].mxu0 %v848
      %v941 = vpop.f32.mrb[0].mxu0
      %v942 = vadd.f32 0.0, %v941
      %v943 = vpop.f32.mrb[0].mxu0
      %944 = vmatprep.mubr.f32.mxu0 0.0
      %945 = vmatmul.mubr.f32.gmra.mrb[0].mxu0 %v851
      %v946 = vpop.f32.mrb[0].mxu0
      %v947 = vadd.f32 0.0, %v946
      %v948 = vpop.f32.mrb[0].mxu0
      %949 = vmatprep.mubr.f32.mxu0 0.0
      %950 = vmatmul.mubr.f32.gmra.mrb[0].mxu0 %v854
      %v951 = vpop.f32.mrb[0].mxu0
      %v952 = vadd.f32 0.0, %v951
      %v953 = vpop.f32.mrb[0].mxu0
      %954 = vmatprep.mubr.f32.mxu0 0.0
      %955 = vmatmul.mubr.f32.gmra.mrb[0].mxu0 %v857
      %v956 = vpop.f32.mrb[0].mxu0
      %v957 = vadd.f32 0.0, %v956
      %v958 = vpop.f32.mrb[0].mxu0
      %959 = vmatprep.mubr.f32.mxu0 0.0
      %960 = vmatmul.mubr.f32.gmra.mrb[0].mxu0 %v860
      %v961 = vpop.f32.mrb[0].mxu0
      %v962 = vadd.f32 0.0, %v961
      %v963 = vpop.f32.mrb[0].mxu0
      %964 = vmatprep.mubr.f32.mxu0 0.0
      %965 = vmatmul.mubr.f32.gmra.mrb[0].mxu0 %v863
      %v966 = vpop.f32.mrb[0].mxu0
      %v967 = vadd.f32 0.0, %v966
      %v968 = vpop.f32.mrb[0].mxu0
      %969 = vmatprep.mubr.f32.mxu0 0.0
      %970 = vmatmul.mubr.f32.gmra.mrb[0].mxu0 %v866
      %v971 = vpop.f32.mrb[0].mxu0
      %v972 = vadd.f32 0.0, %v971
      %v973 = vpop.f32.mrb[0].mxu0
      %974 = vmatprep.mubr.f32.mxu0 0.0
      %975 = vmatmul.mubr.f32.gmra.mrb[0].mxu0 %v869
      %v976 = vpop.f32.mrb[0].mxu0
      %v977 = vadd.f32 0.0, %v976
      %v978 = vpop.f32.mrb[0].mxu0
      %979 = vdwg.mxu0
      %v981 = vsel %vm846, %v456, 0
      %v984 = vsel %vm846, %v458, 0
      %v987 = vsel %vm846, %v460, 0
      %v990 = vsel %vm846, %v462, 0
      %v993 = vsel %vm846, %v464, 0
      %v996 = vsel %vm846, %v466, 0
      %v999 = vsel %vm846, %v468, 0
      %v1002 = vsel %vm846, %v470, 0
      %v1005 = vsel %vm871, %v843, 0
      %1007 = vmatprep.subr.mxu0 0.0
      %1008 = vmatpush1.msra.mxu0 %v1005
      %1009 = vmatprep.subr.mxu0 0.0
      %1010 = vmatpush1.msra.mxu0 0.0
      %1011 = vmatprep.subr.mxu0 0.0
      %1012 = vmatpush1.msra.mxu0 0.0
      %1013 = vmatprep.subr.mxu0 0.0
      %1014 = vmatpush1.msra.mxu0 0.0
      %1015 = vmatprep.subr.mxu0 0.0
      %1016 = vmatpush1.msra.mxu0 0.0
      %1017 = vmatprep.subr.mxu0 0.0
      %1018 = vmatpush1.msra.mxu0 0.0
      %1019 = vmatprep.subr.mxu0 0.0
      %1020 = vmatpush1.msra.mxu0 0.0
      %1021 = vmatprep.subr.mxu0 0.0
      %1022 = vmatpush1.msra.mxu0 0.0
      %1023 = vmatprep.subr.mxu0 0.0
      %1024 = vmatpush1.msra.mxu0 0.0
      %1025 = vmatprep.subr.mxu0 0.0
      %1026 = vmatpush1.msra.mxu0 0.0
      %1027 = vmatprep.subr.mxu0 0.0
      %1028 = vmatpush1.msra.mxu0 0.0
      %1029 = vmatprep.subr.mxu0 0.0
      %1030 = vmatpush1.msra.mxu0 0.0
      %1031 = vmatprep.subr.mxu0 0.0
      %1032 = vmatpush1.msra.mxu0 0.0
      %1033 = vmatprep.subr.mxu0 0.0
      %1034 = vmatpush1.msra.mxu0 0.0
      %1035 = vmatprep.subr.mxu0 0.0
      %1036 = vmatpush1.msra.mxu0 0.0
      %1037 = vmatprep.subr.mxu0 0.0
      %1038 = vmatpush1.msra.mxu0 0.0
      %1039 = vmatprep.subr.mxu0 0.0
      %1040 = vmatpush1.msra.mxu0 0.0
      %1041 = vmatprep.subr.mxu0 0.0
      %1042 = vmatpush1.msra.mxu0 0.0
      %1043 = vmatprep.subr.mxu0 0.0
      %1044 = vmatpush1.msra.mxu0 0.0
      %1045 = vmatprep.subr.mxu0 0.0
      %1046 = vmatpush1.msra.mxu0 0.0
      %1047 = vmatprep.subr.mxu0 0.0
      %1048 = vmatpush1.msra.mxu0 0.0
      %1049 = vmatprep.subr.mxu0 0.0
      %1050 = vmatpush1.msra.mxu0 0.0
      %1051 = vmatprep.subr.mxu0 0.0
      %1052 = vmatpush1.msra.mxu0 0.0
      %1053 = vmatprep.subr.mxu0 0.0
      %1054 = vmatpush1.msra.mxu0 0.0
      %1055 = vmatprep.subr.mxu0 0.0
      %1056 = vmatpush1.msra.mxu0 0.0
      %1057 = vmatprep.subr.mxu0 0.0
      %1058 = vmatpush1.msra.mxu0 0.0
      %1059 = vmatprep.subr.mxu0 0.0
      %1060 = vmatpush1.msra.mxu0 0.0
      %1061 = vmatprep.subr.mxu0 0.0
      %1062 = vmatpush1.msra.mxu0 0.0
      %1063 = vmatprep.subr.mxu0 0.0
      %1064 = vmatpush1.msra.mxu0 0.0
      %1065 = vmatprep.subr.mxu0 0.0
      %1066 = vmatpush1.msra.mxu0 0.0
      %1067 = vmatprep.subr.mxu0 0.0
      %1068 = vmatpush1.msra.mxu0 0.0
      %1069 = vmatprep.subr.mxu0 0.0
      %1070 = vmatpush1.msra.mxu0 0.0
      %1071 = vmatprep.mubr.f32.mxu0 0.0
      %1072 = vmatmul.mubr.f32.gmra.mrb[0].mxu0 %v981
      %v1073 = vpop.f32.mrb[0].mxu0
      %v1074 = vadd.f32 %v942, %v1073
      %v1075 = vpop.f32.mrb[0].mxu0
      %1076 = vmatprep.mubr.f32.mxu0 0.0
      %1077 = vmatmul.mubr.f32.gmra.mrb[0].mxu0 %v984
      %v1078 = vpop.f32.mrb[0].mxu0
      %v1079 = vadd.f32 %v947, %v1078
      %v1080 = vpop.f32.mrb[0].mxu0
      %1081 = vmatprep.mubr.f32.mxu0 0.0
      %1082 = vmatmul.mubr.f32.gmra.mrb[0].mxu0 %v987
      %v1083 = vpop.f32.mrb[0].mxu0
      %v1084 = vadd.f32 %v952, %v1083
      %v1085 = vpop.f32.mrb[0].mxu0
      %1086 = vmatprep.mubr.f32.mxu0 0.0
      %1087 = vmatmul.mubr.f32.gmra.mrb[0].mxu0 %v990
      %v1088 = vpop.f32.mrb[0].mxu0
      %v1089 = vadd.f32 %v957, %v1088
      %v1090 = vpop.f32.mrb[0].mxu0
      %1091 = vmatprep.mubr.f32.mxu0 0.0
      %1092 = vmatmul.mubr.f32.gmra.mrb[0].mxu0 %v993
      %v1093 = vpop.f32.mrb[0].mxu0
      %v1094 = vadd.f32 %v962, %v1093
      %v1095 = vpop.f32.mrb[0].mxu0
      %1096 = vmatprep.mubr.f32.mxu0 0.0
      %1097 = vmatmul.mubr.f32.gmra.mrb[0].mxu0 %v996
      %v1098 = vpop.f32.mrb[0].mxu0
      %v1099 = vadd.f32 %v967, %v1098
      %v1100 = vpop.f32.mrb[0].mxu0
      %1101 = vmatprep.mubr.f32.mxu0 0.0
      %1102 = vmatmul.mubr.f32.gmra.mrb[0].mxu0 %v999
      %v1103 = vpop.f32.mrb[0].mxu0
      %v1104 = vadd.f32 %v972, %v1103
      %v1105 = vpop.f32.mrb[0].mxu0
      %1106 = vmatprep.mubr.f32.mxu0 0.0
      %1107 = vmatmul.mubr.f32.gmra.mrb[0].mxu0 %v1002
      %v1108 = vpop.f32.mrb[0].mxu0
      %v1109 = vadd.f32 %v977, %v1108
      %v1110 = vpop.f32.mrb[0].mxu0
      %1111 = vdwg.mxu0
      %vm1120 = vcmask 1046528
      %v1121 = vrot.slane %v456, 1
      %v1122 = vrot.slane %v457, 1
      %v1123 = vsel %vm1120, %v1121, %v1122
      %v1124 = vrot.slane %v458, 1
      %v1125 = vrot.slane %v459, 1
      %v1126 = vsel %vm1120, %v1124, %v1125
      %v1127 = vrot.slane %v460, 1
      %v1128 = vrot.slane %v461, 1
      %v1129 = vsel %vm1120, %v1127, %v1128
      %v1130 = vrot.slane %v462, 1
      %v1131 = vrot.slane %v463, 1
      %v1132 = vsel %vm1120, %v1130, %v1131
      %v1133 = vrot.slane %v464, 1
      %v1134 = vrot.slane %v465, 1
      %v1135 = vsel %vm1120, %v1133, %v1134
      %v1136 = vrot.slane %v466, 1
      %v1137 = vrot.slane %v467, 1
      %v1138 = vsel %vm1120, %v1136, %v1137
      %v1139 = vrot.slane %v468, 1
      %v1140 = vrot.slane %v469, 1
      %v1141 = vsel %vm1120, %v1139, %v1140
      %v1142 = vrot.slane %v470, 1
      %v1143 = vrot.slane %v471, 1
      %v1144 = vsel %vm1120, %v1142, %v1143
      %s1145 = scalar_lea.vmem %s253, 8
      %v1146 = vld [vmem:[%s1145] sm:$0xf]
      %v1147 = vsel %vm846, %v1123, 0
      %v1149 = vsel %vm846, %v1126, 0
      %v1151 = vsel %vm846, %v1129, 0
      %v1153 = vsel %vm846, %v1132, 0
      %v1155 = vsel %vm846, %v1135, 0
      %v1157 = vsel %vm846, %v1138, 0
      %v1159 = vsel %vm846, %v1141, 0
      %v1161 = vsel %vm846, %v1144, 0
      %v1164 = vsel %vm871, %v1146, 0
      %1166 = vmatprep.subr.mxu0 0.0
      %1167 = vmatpush1.msra.mxu0 %v1164
      %1168 = vmatprep.subr.mxu0 0.0
      %1169 = vmatpush1.msra.mxu0 0.0
      %1170 = vmatprep.subr.mxu0 0.0
      %1171 = vmatpush1.msra.mxu0 0.0
      %1172 = vmatprep.subr.mxu0 0.0
      %1173 = vmatpush1.msra.mxu0 0.0
      %1174 = vmatprep.subr.mxu0 0.0
      %1175 = vmatpush1.msra.mxu0 0.0
      %1176 = vmatprep.subr.mxu0 0.0
      %1177 = vmatpush1.msra.mxu0 0.0
      %1178 = vmatprep.subr.mxu0 0.0
      %1179 = vmatpush1.msra.mxu0 0.0
      %1180 = vmatprep.subr.mxu0 0.0
      %1181 = vmatpush1.msra.mxu0 0.0
      %1182 = vmatprep.subr.mxu0 0.0
      %1183 = vmatpush1.msra.mxu0 0.0
      %1184 = vmatprep.subr.mxu0 0.0
      %1185 = vmatpush1.msra.mxu0 0.0
      %1186 = vmatprep.subr.mxu0 0.0
      %1187 = vmatpush1.msra.mxu0 0.0
      %1188 = vmatprep.subr.mxu0 0.0
      %1189 = vmatpush1.msra.mxu0 0.0
      %1190 = vmatprep.subr.mxu0 0.0
      %1191 = vmatpush1.msra.mxu0 0.0
      %1192 = vmatprep.subr.mxu0 0.0
      %1193 = vmatpush1.msra.mxu0 0.0
      %1194 = vmatprep.subr.mxu0 0.0
      %1195 = vmatpush1.msra.mxu0 0.0
      %1196 = vmatprep.subr.mxu0 0.0
      %1197 = vmatpush1.msra.mxu0 0.0
      %1198 = vmatprep.subr.mxu0 0.0
      %1199 = vmatpush1.msra.mxu0 0.0
      %1200 = vmatprep.subr.mxu0 0.0
      %1201 = vmatpush1.msra.mxu0 0.0
      %1202 = vmatprep.subr.mxu0 0.0
      %1203 = vmatpush1.msra.mxu0 0.0
      %1204 = vmatprep.subr.mxu0 0.0
      %1205 = vmatpush1.msra.mxu0 0.0
      %1206 = vmatprep.subr.mxu0 0.0
      %1207 = vmatpush1.msra.mxu0 0.0
      %1208 = vmatprep.subr.mxu0 0.0
      %1209 = vmatpush1.msra.mxu0 0.0
      %1210 = vmatprep.subr.mxu0 0.0
      %1211 = vmatpush1.msra.mxu0 0.0
      %1212 = vmatprep.subr.mxu0 0.0
      %1213 = vmatpush1.msra.mxu0 0.0
      %1214 = vmatprep.subr.mxu0 0.0
      %1215 = vmatpush1.msra.mxu0 0.0
      %1216 = vmatprep.subr.mxu0 0.0
      %1217 = vmatpush1.msra.mxu0 0.0
      %1218 = vmatprep.subr.mxu0 0.0
      %1219 = vmatpush1.msra.mxu0 0.0
      %1220 = vmatprep.subr.mxu0 0.0
      %1221 = vmatpush1.msra.mxu0 0.0
      %1222 = vmatprep.subr.mxu0 0.0
      %1223 = vmatpush1.msra.mxu0 0.0
      %1224 = vmatprep.subr.mxu0 0.0
      %1225 = vmatpush1.msra.mxu0 0.0
      %1226 = vmatprep.subr.mxu0 0.0
      %1227 = vmatpush1.msra.mxu0 0.0
      %1228 = vmatprep.subr.mxu0 0.0
      %1229 = vmatpush1.msra.mxu0 0.0
      %1230 = vmatprep.mubr.f32.mxu0 0.0
      %1231 = vmatmul.mubr.f32.gmra.mrb[0].mxu0 %v1147
      %v1232 = vpop.f32.mrb[0].mxu0
      %v1233 = vadd.f32 0.0, %v1232
      %v1234 = vpop.f32.mrb[0].mxu0
      %1235 = vmatprep.mubr.f32.mxu0 0.0
      %1236 = vmatmul.mubr.f32.gmra.mrb[0].mxu0 %v1149
      %v1237 = vpop.f32.mrb[0].mxu0
      %v1238 = vadd.f32 0.0, %v1237
      %v1239 = vpop.f32.mrb[0].mxu0
      %1240 = vmatprep.mubr.f32.mxu0 0.0
      %1241 = vmatmul.mubr.f32.gmra.mrb[0].mxu0 %v1151
      %v1242 = vpop.f32.mrb[0].mxu0
      %v1243 = vadd.f32 0.0, %v1242
      %v1244 = vpop.f32.mrb[0].mxu0
      %1245 = vmatprep.mubr.f32.mxu0 0.0
      %1246 = vmatmul.mubr.f32.gmra.mrb[0].mxu0 %v1153
      %v1247 = vpop.f32.mrb[0].mxu0
      %v1248 = vadd.f32 0.0, %v1247
      %v1249 = vpop.f32.mrb[0].mxu0
      %1250 = vmatprep.mubr.f32.mxu0 0.0
      %1251 = vmatmul.mubr.f32.gmra.mrb[0].mxu0 %v1155
      %v1252 = vpop.f32.mrb[0].mxu0
      %v1253 = vadd.f32 0.0, %v1252
      %v1254 = vpop.f32.mrb[0].mxu0
      %1255 = vmatprep.mubr.f32.mxu0 0.0
      %1256 = vmatmul.mubr.f32.gmra.mrb[0].mxu0 %v1157
      %v1257 = vpop.f32.mrb[0].mxu0
      %v1258 = vadd.f32 0.0, %v1257
      %v1259 = vpop.f32.mrb[0].mxu0
      %1260 = vmatprep.mubr.f32.mxu0 0.0
      %1261 = vmatmul.mubr.f32.gmra.mrb[0].mxu0 %v1159
      %v1262 = vpop.f32.mrb[0].mxu0
      %v1263 = vadd.f32 0.0, %v1262
      %v1264 = vpop.f32.mrb[0].mxu0
      %1265 = vmatprep.mubr.f32.mxu0 0.0
      %1266 = vmatmul.mubr.f32.gmra.mrb[0].mxu0 %v1161
      %v1267 = vpop.f32.mrb[0].mxu0
      %v1268 = vadd.f32 0.0, %v1267
      %v1269 = vpop.f32.mrb[0].mxu0
      %1270 = vdwg.mxu0
      %v1271 = vadd.f32 %v1074, %v1233
      %v1272 = vadd.f32 %v1079, %v1238
      %v1273 = vadd.f32 %v1084, %v1243
      %v1274 = vadd.f32 %v1089, %v1248
      %v1275 = vadd.f32 %v1094, %v1253
      %v1276 = vadd.f32 %v1099, %v1258
      %v1277 = vadd.f32 %v1104, %v1263
      %v1278 = vadd.f32 %v1109, %v1268
      %s1279 = scalar_lea.vmem %s253, 12
      %v1280 = vld [vmem:[%s1279] sm:$0xf]
      %v1282 = vsel %vm846, %v737, 0
      %v1285 = vsel %vm846, %v739, 0
      %v1288 = vsel %vm846, %v741, 0
      %v1291 = vsel %vm846, %v743, 0
      %v1294 = vsel %vm846, %v745, 0
      %v1297 = vsel %vm846, %v747, 0
      %v1300 = vsel %vm846, %v749, 0
      %v1303 = vsel %vm846, %v751, 0
      %v1306 = vsel %vm871, %v1280, 0
      %1308 = vmatprep.subr.mxu0 0.0
      %1309 = vmatpush1.msra.mxu0 %v1306
      %1310 = vmatprep.subr.mxu0 0.0
      %1311 = vmatpush1.msra.mxu0 0.0
      %1312 = vmatprep.subr.mxu0 0.0
      %1313 = vmatpush1.msra.mxu0 0.0
      %1314 = vmatprep.subr.mxu0 0.0
      %1315 = vmatpush1.msra.mxu0 0.0
      %1316 = vmatprep.subr.mxu0 0.0
      %1317 = vmatpush1.msra.mxu0 0.0
      %1318 = vmatprep.subr.mxu0 0.0
      %1319 = vmatpush1.msra.mxu0 0.0
      %1320 = vmatprep.subr.mxu0 0.0
      %1321 = vmatpush1.msra.mxu0 0.0
      %1322 = vmatprep.subr.mxu0 0.0
      %1323 = vmatpush1.msra.mxu0 0.0
      %1324 = vmatprep.subr.mxu0 0.0
      %1325 = vmatpush1.msra.mxu0 0.0
      %1326 = vmatprep.subr.mxu0 0.0
      %1327 = vmatpush1.msra.mxu0 0.0
      %1328 = vmatprep.subr.mxu0 0.0
      %1329 = vmatpush1.msra.mxu0 0.0
      %1330 = vmatprep.subr.mxu0 0.0
      %1331 = vmatpush1.msra.mxu0 0.0
      %1332 = vmatprep.subr.mxu0 0.0
      %1333 = vmatpush1.msra.mxu0 0.0
      %1334 = vmatprep.subr.mxu0 0.0
      %1335 = vmatpush1.msra.mxu0 0.0
      %1336 = vmatprep.subr.mxu0 0.0
      %1337 = vmatpush1.msra.mxu0 0.0
      %1338 = vmatprep.subr.mxu0 0.0
      %1339 = vmatpush1.msra.mxu0 0.0
      %1340 = vmatprep.subr.mxu0 0.0
      %1341 = vmatpush1.msra.mxu0 0.0
      %1342 = vmatprep.subr.mxu0 0.0
      %1343 = vmatpush1.msra.mxu0 0.0
      %1344 = vmatprep.subr.mxu0 0.0
      %1345 = vmatpush1.msra.mxu0 0.0
      %1346 = vmatprep.subr.mxu0 0.0
      %1347 = vmatpush1.msra.mxu0 0.0
      %1348 = vmatprep.subr.mxu0 0.0
      %1349 = vmatpush1.msra.mxu0 0.0
      %1350 = vmatprep.subr.mxu0 0.0
      %1351 = vmatpush1.msra.mxu0 0.0
      %1352 = vmatprep.subr.mxu0 0.0
      %1353 = vmatpush1.msra.mxu0 0.0
      %1354 = vmatprep.subr.mxu0 0.0
      %1355 = vmatpush1.msra.mxu0 0.0
      %1356 = vmatprep.subr.mxu0 0.0
      %1357 = vmatpush1.msra.mxu0 0.0
      %1358 = vmatprep.subr.mxu0 0.0
      %1359 = vmatpush1.msra.mxu0 0.0
      %1360 = vmatprep.subr.mxu0 0.0
      %1361 = vmatpush1.msra.mxu0 0.0
      %1362 = vmatprep.subr.mxu0 0.0
      %1363 = vmatpush1.msra.mxu0 0.0
      %1364 = vmatprep.subr.mxu0 0.0
      %1365 = vmatpush1.msra.mxu0 0.0
      %1366 = vmatprep.subr.mxu0 0.0
      %1367 = vmatpush1.msra.mxu0 0.0
      %1368 = vmatprep.subr.mxu0 0.0
      %1369 = vmatpush1.msra.mxu0 0.0
      %1370 = vmatprep.subr.mxu0 0.0
      %1371 = vmatpush1.msra.mxu0 0.0
      %1372 = vmatprep.mubr.f32.mxu0 0.0
      %1373 = vmatmul.mubr.f32.gmra.mrb[0].mxu0 %v1282
      %v1374 = vpop.f32.mrb[0].mxu0
      %v1375 = vadd.f32 0.0, %v1374
      %v1376 = vpop.f32.mrb[0].mxu0
      %1377 = vmatprep.mubr.f32.mxu0 0.0
      %1378 = vmatmul.mubr.f32.gmra.mrb[0].mxu0 %v1285
      %v1379 = vpop.f32.mrb[0].mxu0
      %v1380 = vadd.f32 0.0, %v1379
      %v1381 = vpop.f32.mrb[0].mxu0
      %1382 = vmatprep.mubr.f32.mxu0 0.0
      %1383 = vmatmul.mubr.f32.gmra.mrb[0].mxu0 %v1288
      %v1384 = vpop.f32.mrb[0].mxu0
      %v1385 = vadd.f32 0.0, %v1384
      %v1386 = vpop.f32.mrb[0].mxu0
      %1387 = vmatprep.mubr.f32.mxu0 0.0
      %1388 = vmatmul.mubr.f32.gmra.mrb[0].mxu0 %v1291
      %v1389 = vpop.f32.mrb[0].mxu0
      %v1390 = vadd.f32 0.0, %v1389
      %v1391 = vpop.f32.mrb[0].mxu0
      %1392 = vmatprep.mubr.f32.mxu0 0.0
      %1393 = vmatmul.mubr.f32.gmra.mrb[0].mxu0 %v1294
      %v1394 = vpop.f32.mrb[0].mxu0
      %v1395 = vadd.f32 0.0, %v1394
      %v1396 = vpop.f32.mrb[0].mxu0
      %1397 = vmatprep.mubr.f32.mxu0 0.0
      %1398 = vmatmul.mubr.f32.gmra.mrb[0].mxu0 %v1297
      %v1399 = vpop.f32.mrb[0].mxu0
      %v1400 = vadd.f32 0.0, %v1399
      %v1401 = vpop.f32.mrb[0].mxu0
      %1402 = vmatprep.mubr.f32.mxu0 0.0
      %1403 = vmatmul.mubr.f32.gmra.mrb[0].mxu0 %v1300
      %v1404 = vpop.f32.mrb[0].mxu0
      %v1405 = vadd.f32 0.0, %v1404
      %v1406 = vpop.f32.mrb[0].mxu0
      %1407 = vmatprep.mubr.f32.mxu0 0.0
      %1408 = vmatmul.mubr.f32.gmra.mrb[0].mxu0 %v1303
      %v1409 = vpop.f32.mrb[0].mxu0
      %v1410 = vadd.f32 0.0, %v1409
      %v1411 = vpop.f32.mrb[0].mxu0
      %1412 = vdwg.mxu0
      %v1413 = vadd.f32 %v1271, %v1375
      %v1414 = vadd.f32 %v1272, %v1380
      %v1415 = vadd.f32 %v1273, %v1385
      %v1416 = vadd.f32 %v1274, %v1390
      %v1417 = vadd.f32 %v1275, %v1395
      %v1418 = vadd.f32 %v1276, %v1400
      %v1419 = vadd.f32 %v1277, %v1405
      %v1420 = vadd.f32 %v1278, %v1410
      %s1421 = scalar_lea.vmem %s253, 16
      %v1422 = vld [vmem:[%s1421] sm:$0xf]
      %v1424 = vsel %vm846, %v835, 0
      %v1427 = vsel %vm846, %v836, 0
      %v1430 = vsel %vm846, %v837, 0
      %v1433 = vsel %vm846, %v838, 0
      %v1436 = vsel %vm846, %v839, 0
      %v1439 = vsel %vm846, %v840, 0
      %v1442 = vsel %vm846, %v841, 0
      %v1445 = vsel %vm846, %v842, 0
      %v1448 = vsel %vm871, %v1422, 0
      %1450 = vmatprep.subr.mxu0 0.0
      %1451 = vmatpush1.msra.mxu0 %v1448
      %1452 = vmatprep.subr.mxu0 0.0
      %1453 = vmatpush1.msra.mxu0 0.0
      %1454 = vmatprep.subr.mxu0 0.0
      %1455 = vmatpush1.msra.mxu0 0.0
      %1456 = vmatprep.subr.mxu0 0.0
      %1457 = vmatpush1.msra.mxu0 0.0
      %1458 = vmatprep.subr.mxu0 0.0
      %1459 = vmatpush1.msra.mxu0 0.0
      %1460 = vmatprep.subr.mxu0 0.0
      %1461 = vmatpush1.msra.mxu0 0.0
      %1462 = vmatprep.subr.mxu0 0.0
      %1463 = vmatpush1.msra.mxu0 0.0
      %1464 = vmatprep.subr.mxu0 0.0
      %1465 = vmatpush1.msra.mxu0 0.0
      %1466 = vmatprep.subr.mxu0 0.0
      %1467 = vmatpush1.msra.mxu0 0.0
      %1468 = vmatprep.subr.mxu0 0.0
      %1469 = vmatpush1.msra.mxu0 0.0
      %1470 = vmatprep.subr.mxu0 0.0
      %1471 = vmatpush1.msra.mxu0 0.0
      %1472 = vmatprep.subr.mxu0 0.0
      %1473 = vmatpush1.msra.mxu0 0.0
      %1474 = vmatprep.subr.mxu0 0.0
      %1475 = vmatpush1.msra.mxu0 0.0
      %1476 = vmatprep.subr.mxu0 0.0
      %1477 = vmatpush1.msra.mxu0 0.0
      %1478 = vmatprep.subr.mxu0 0.0
      %1479 = vmatpush1.msra.mxu0 0.0
      %1480 = vmatprep.subr.mxu0 0.0
      %1481 = vmatpush1.msra.mxu0 0.0
      %1482 = vmatprep.subr.mxu0 0.0
      %1483 = vmatpush1.msra.mxu0 0.0
      %1484 = vmatprep.subr.mxu0 0.0
      %1485 = vmatpush1.msra.mxu0 0.0
      %1486 = vmatprep.subr.mxu0 0.0
      %1487 = vmatpush1.msra.mxu0 0.0
      %1488 = vmatprep.subr.mxu0 0.0
      %1489 = vmatpush1.msra.mxu0 0.0
      %1490 = vmatprep.subr.mxu0 0.0
      %1491 = vmatpush1.msra.mxu0 0.0
      %1492 = vmatprep.subr.mxu0 0.0
      %1493 = vmatpush1.msra.mxu0 0.0
      %1494 = vmatprep.subr.mxu0 0.0
      %1495 = vmatpush1.msra.mxu0 0.0
      %1496 = vmatprep.subr.mxu0 0.0
      %1497 = vmatpush1.msra.mxu0 0.0
      %1498 = vmatprep.subr.mxu0 0.0
      %1499 = vmatpush1.msra.mxu0 0.0
      %1500 = vmatprep.subr.mxu0 0.0
      %1501 = vmatpush1.msra.mxu0 0.0
      %1502 = vmatprep.subr.mxu0 0.0
      %1503 = vmatpush1.msra.mxu0 0.0
      %1504 = vmatprep.subr.mxu0 0.0
      %1505 = vmatpush1.msra.mxu0 0.0
      %1506 = vmatprep.subr.mxu0 0.0
      %1507 = vmatpush1.msra.mxu0 0.0
      %1508 = vmatprep.subr.mxu0 0.0
      %1509 = vmatpush1.msra.mxu0 0.0
      %1510 = vmatprep.subr.mxu0 0.0
      %1511 = vmatpush1.msra.mxu0 0.0
      %1512 = vmatprep.subr.mxu0 0.0
      %1513 = vmatpush1.msra.mxu0 0.0
      %1514 = vmatprep.mubr.f32.mxu0 0.0
      %1515 = vmatmul.mubr.f32.gmra.mrb[0].mxu0 %v1424
      %v1516 = vpop.f32.mrb[0].mxu0
      %v1517 = vadd.f32 0.0, %v1516
      %v1518 = vpop.f32.mrb[0].mxu0
      %1519 = vmatprep.mubr.f32.mxu0 0.0
      %1520 = vmatmul.mubr.f32.gmra.mrb[0].mxu0 %v1427
      %v1521 = vpop.f32.mrb[0].mxu0
      %v1522 = vadd.f32 0.0, %v1521
      %v1523 = vpop.f32.mrb[0].mxu0
      %1524 = vmatprep.mubr.f32.mxu0 0.0
      %1525 = vmatmul.mubr.f32.gmra.mrb[0].mxu0 %v1430
      %v1526 = vpop.f32.mrb[0].mxu0
      %v1527 = vadd.f32 0.0, %v1526
      %v1528 = vpop.f32.mrb[0].mxu0
      %1529 = vmatprep.mubr.f32.mxu0 0.0
      %1530 = vmatmul.mubr.f32.gmra.mrb[0].mxu0 %v1433
      %v1531 = vpop.f32.mrb[0].mxu0
      %v1532 = vadd.f32 0.0, %v1531
      %v1533 = vpop.f32.mrb[0].mxu0
      %1534 = vmatprep.mubr.f32.mxu0 0.0
      %1535 = vmatmul.mubr.f32.gmra.mrb[0].mxu0 %v1436
      %v1536 = vpop.f32.mrb[0].mxu0
      %v1537 = vadd.f32 0.0, %v1536
      %v1538 = vpop.f32.mrb[0].mxu0
      %1539 = vmatprep.mubr.f32.mxu0 0.0
      %1540 = vmatmul.mubr.f32.gmra.mrb[0].mxu0 %v1439
      %v1541 = vpop.f32.mrb[0].mxu0
      %v1542 = vadd.f32 0.0, %v1541
      %v1543 = vpop.f32.mrb[0].mxu0
      %1544 = vmatprep.mubr.f32.mxu0 0.0
      %1545 = vmatmul.mubr.f32.gmra.mrb[0].mxu0 %v1442
      %v1546 = vpop.f32.mrb[0].mxu0
      %v1547 = vadd.f32 0.0, %v1546
      %v1548 = vpop.f32.mrb[0].mxu0
      %1549 = vmatprep.mubr.f32.mxu0 0.0
      %1550 = vmatmul.mubr.f32.gmra.mrb[0].mxu0 %v1445
      %v1551 = vpop.f32.mrb[0].mxu0
      %v1552 = vadd.f32 0.0, %v1551
      %v1553 = vpop.f32.mrb[0].mxu0
      %1554 = vdwg.mxu0
      %v1555 = vadd.f32 %v1413, %v1517
      %v1556 = vadd.f32 %v1414, %v1522
      %v1557 = vadd.f32 %v1415, %v1527
      %v1558 = vadd.f32 %v1416, %v1532
      %v1559 = vadd.f32 %v1417, %v1537
      %v1560 = vadd.f32 %v1418, %v1542
      %v1561 = vadd.f32 %v1419, %v1547
      %v1562 = vadd.f32 %v1420, %v1552
      %v1571 = vrot.slane %v737, 1
      %v1572 = vrot.slane %v738, 1
      %v1573 = vsel %vm1120, %v1571, %v1572
      %v1574 = vrot.slane %v739, 1
      %v1575 = vrot.slane %v740, 1
      %v1576 = vsel %vm1120, %v1574, %v1575
      %v1577 = vrot.slane %v741, 1
      %v1578 = vrot.slane %v742, 1
      %v1579 = vsel %vm1120, %v1577, %v1578
      %v1580 = vrot.slane %v743, 1
      %v1581 = vrot.slane %v744, 1
      %v1582 = vsel %vm1120, %v1580, %v1581
      %v1583 = vrot.slane %v745, 1
      %v1584 = vrot.slane %v746, 1
      %v1585 = vsel %vm1120, %v1583, %v1584
      %v1586 = vrot.slane %v747, 1
      %v1587 = vrot.slane %v748, 1
      %v1588 = vsel %vm1120, %v1586, %v1587
      %v1589 = vrot.slane %v749, 1
      %v1590 = vrot.slane %v750, 1
      %v1591 = vsel %vm1120, %v1589, %v1590
      %v1592 = vrot.slane %v751, 1
      %v1593 = vrot.slane %v752, 1
      %v1594 = vsel %vm1120, %v1592, %v1593
      %s1595 = scalar_lea.vmem %s253, 20
      %v1596 = vld [vmem:[%s1595] sm:$0xf]
      %v1597 = vsel %vm846, %v1573, 0
      %v1599 = vsel %vm846, %v1576, 0
      %v1601 = vsel %vm846, %v1579, 0
      %v1603 = vsel %vm846, %v1582, 0
      %v1605 = vsel %vm846, %v1585, 0
      %v1607 = vsel %vm846, %v1588, 0
      %v1609 = vsel %vm846, %v1591, 0
      %v1611 = vsel %vm846, %v1594, 0
      %v1614 = vsel %vm871, %v1596, 0
      %1616 = vmatprep.subr.mxu0 0.0
      %1617 = vmatpush1.msra.mxu0 %v1614
      %1618 = vmatprep.subr.mxu0 0.0
      %1619 = vmatpush1.msra.mxu0 0.0
      %1620 = vmatprep.subr.mxu0 0.0
      %1621 = vmatpush1.msra.mxu0 0.0
      %1622 = vmatprep.subr.mxu0 0.0
      %1623 = vmatpush1.msra.mxu0 0.0
      %1624 = vmatprep.subr.mxu0 0.0
      %1625 = vmatpush1.msra.mxu0 0.0
      %1626 = vmatprep.subr.mxu0 0.0
      %1627 = vmatpush1.msra.mxu0 0.0
      %1628 = vmatprep.subr.mxu0 0.0
      %1629 = vmatpush1.msra.mxu0 0.0
      %1630 = vmatprep.subr.mxu0 0.0
      %1631 = vmatpush1.msra.mxu0 0.0
      %1632 = vmatprep.subr.mxu0 0.0
      %1633 = vmatpush1.msra.mxu0 0.0
      %1634 = vmatprep.subr.mxu0 0.0
      %1635 = vmatpush1.msra.mxu0 0.0
      %1636 = vmatprep.subr.mxu0 0.0
      %1637 = vmatpush1.msra.mxu0 0.0
      %1638 = vmatprep.subr.mxu0 0.0
      %1639 = vmatpush1.msra.mxu0 0.0
      %1640 = vmatprep.subr.mxu0 0.0
      %1641 = vmatpush1.msra.mxu0 0.0
      %1642 = vmatprep.subr.mxu0 0.0
      %1643 = vmatpush1.msra.mxu0 0.0
      %1644 = vmatprep.subr.mxu0 0.0
      %1645 = vmatpush1.msra.mxu0 0.0
      %1646 = vmatprep.subr.mxu0 0.0
      %1647 = vmatpush1.msra.mxu0 0.0
      %1648 = vmatprep.subr.mxu0 0.0
      %1649 = vmatpush1.msra.mxu0 0.0
      %1650 = vmatprep.subr.mxu0 0.0
      %1651 = vmatpush1.msra.mxu0 0.0
      %1652 = vmatprep.subr.mxu0 0.0
      %1653 = vmatpush1.msra.mxu0 0.0
      %1654 = vmatprep.subr.mxu0 0.0
      %1655 = vmatpush1.msra.mxu0 0.0
      %1656 = vmatprep.subr.mxu0 0.0
      %1657 = vmatpush1.msra.mxu0 0.0
      %1658 = vmatprep.subr.mxu0 0.0
      %1659 = vmatpush1.msra.mxu0 0.0
      %1660 = vmatprep.subr.mxu0 0.0
      %1661 = vmatpush1.msra.mxu0 0.0
      %1662 = vmatprep.subr.mxu0 0.0
      %1663 = vmatpush1.msra.mxu0 0.0
      %1664 = vmatprep.subr.mxu0 0.0
      %1665 = vmatpush1.msra.mxu0 0.0
      %1666 = vmatprep.subr.mxu0 0.0
      %1667 = vmatpush1.msra.mxu0 0.0
      %1668 = vmatprep.subr.mxu0 0.0
      %1669 = vmatpush1.msra.mxu0 0.0
      %1670 = vmatprep.subr.mxu0 0.0
      %1671 = vmatpush1.msra.mxu0 0.0
      %1672 = vmatprep.subr.mxu0 0.0
      %1673 = vmatpush1.msra.mxu0 0.0
      %1674 = vmatprep.subr.mxu0 0.0
      %1675 = vmatpush1.msra.mxu0 0.0
      %1676 = vmatprep.subr.mxu0 0.0
      %1677 = vmatpush1.msra.mxu0 0.0
      %1678 = vmatprep.subr.mxu0 0.0
      %1679 = vmatpush1.msra.mxu0 0.0
      %1680 = vmatprep.mubr.f32.mxu0 0.0
      %1681 = vmatmul.mubr.f32.gmra.mrb[0].mxu0 %v1597
      %v1682 = vpop.f32.mrb[0].mxu0
      %v1683 = vadd.f32 0.0, %v1682
      %v1684 = vpop.f32.mrb[0].mxu0
      %1685 = vmatprep.mubr.f32.mxu0 0.0
      %1686 = vmatmul.mubr.f32.gmra.mrb[0].mxu0 %v1599
      %v1687 = vpop.f32.mrb[0].mxu0
      %v1688 = vadd.f32 0.0, %v1687
      %v1689 = vpop.f32.mrb[0].mxu0
      %1690 = vmatprep.mubr.f32.mxu0 0.0
      %1691 = vmatmul.mubr.f32.gmra.mrb[0].mxu0 %v1601
      %v1692 = vpop.f32.mrb[0].mxu0
      %v1693 = vadd.f32 0.0, %v1692
      %v1694 = vpop.f32.mrb[0].mxu0
      %1695 = vmatprep.mubr.f32.mxu0 0.0
      %1696 = vmatmul.mubr.f32.gmra.mrb[0].mxu0 %v1603
      %v1697 = vpop.f32.mrb[0].mxu0
      %v1698 = vadd.f32 0.0, %v1697
      %v1699 = vpop.f32.mrb[0].mxu0
      %1700 = vmatprep.mubr.f32.mxu0 0.0
      %1701 = vmatmul.mubr.f32.gmra.mrb[0].mxu0 %v1605
      %v1702 = vpop.f32.mrb[0].mxu0
      %v1703 = vadd.f32 0.0, %v1702
      %v1704 = vpop.f32.mrb[0].mxu0
      %1705 = vmatprep.mubr.f32.mxu0 0.0
      %1706 = vmatmul.mubr.f32.gmra.mrb[0].mxu0 %v1607
      %v1707 = vpop.f32.mrb[0].mxu0
      %v1708 = vadd.f32 0.0, %v1707
      %v1709 = vpop.f32.mrb[0].mxu0
      %1710 = vmatprep.mubr.f32.mxu0 0.0
      %1711 = vmatmul.mubr.f32.gmra.mrb[0].mxu0 %v1609
      %v1712 = vpop.f32.mrb[0].mxu0
      %v1713 = vadd.f32 0.0, %v1712
      %v1714 = vpop.f32.mrb[0].mxu0
      %1715 = vmatprep.mubr.f32.mxu0 0.0
      %1716 = vmatmul.mubr.f32.gmra.mrb[0].mxu0 %v1611
      %v1717 = vpop.f32.mrb[0].mxu0
      %v1718 = vadd.f32 0.0, %v1717
      %v1719 = vpop.f32.mrb[0].mxu0
      %1720 = vdwg.mxu0
      %v1721 = vadd.f32 %v1555, %v1683
      %v1722 = vadd.f32 %v1556, %v1688
      %v1723 = vadd.f32 %v1557, %v1693
      %v1724 = vadd.f32 %v1558, %v1698
      %v1725 = vadd.f32 %v1559, %v1703
      %v1726 = vadd.f32 %v1560, %v1708
      %v1727 = vadd.f32 %v1561, %v1713
      %v1728 = vadd.f32 %v1562, %v1718
      %s1729 = scalar_lea.vmem %s253, 24
      %v1730 = vld [vmem:[%s1729] sm:$0xf]
      %v1732 = vsel %vm846, %v472, 0
      %v1735 = vsel %vm871, %v1730, 0
      %1737 = vmatprep.subr.mxu0 0.0
      %1738 = vmatpush1.msra.mxu0 %v1735
      %1739 = vmatprep.subr.mxu0 0.0
      %1740 = vmatpush1.msra.mxu0 0.0
      %1741 = vmatprep.subr.mxu0 0.0
      %1742 = vmatpush1.msra.mxu0 0.0
      %1743 = vmatprep.subr.mxu0 0.0
      %1744 = vmatpush1.msra.mxu0 0.0
      %1745 = vmatprep.subr.mxu0 0.0
      %1746 = vmatpush1.msra.mxu0 0.0
      %1747 = vmatprep.subr.mxu0 0.0
      %1748 = vmatpush1.msra.mxu0 0.0
      %1749 = vmatprep.subr.mxu0 0.0
      %1750 = vmatpush1.msra.mxu0 0.0
      %1751 = vmatprep.subr.mxu0 0.0
      %1752 = vmatpush1.msra.mxu0 0.0
      %1753 = vmatprep.subr.mxu0 0.0
      %1754 = vmatpush1.msra.mxu0 0.0
      %1755 = vmatprep.subr.mxu0 0.0
      %1756 = vmatpush1.msra.mxu0 0.0
      %1757 = vmatprep.subr.mxu0 0.0
      %1758 = vmatpush1.msra.mxu0 0.0
      %1759 = vmatprep.subr.mxu0 0.0
      %1760 = vmatpush1.msra.mxu0 0.0
      %1761 = vmatprep.subr.mxu0 0.0
      %1762 = vmatpush1.msra.mxu0 0.0
      %1763 = vmatprep.subr.mxu0 0.0
      %1764 = vmatpush1.msra.mxu0 0.0
      %1765 = vmatprep.subr.mxu0 0.0
      %1766 = vmatpush1.msra.mxu0 0.0
      %1767 = vmatprep.subr.mxu0 0.0
      %1768 = vmatpush1.msra.mxu0 0.0
      %1769 = vmatprep.subr.mxu0 0.0
      %1770 = vmatpush1.msra.mxu0 0.0
      %1771 = vmatprep.subr.mxu0 0.0
      %1772 = vmatpush1.msra.mxu0 0.0
      %1773 = vmatprep.subr.mxu0 0.0
      %1774 = vmatpush1.msra.mxu0 0.0
      %1775 = vmatprep.subr.mxu0 0.0
      %1776 = vmatpush1.msra.mxu0 0.0
      %1777 = vmatprep.subr.mxu0 0.0
      %1778 = vmatpush1.msra.mxu0 0.0
      %1779 = vmatprep.subr.mxu0 0.0
      %1780 = vmatpush1.msra.mxu0 0.0
      %1781 = vmatprep.subr.mxu0 0.0
      %1782 = vmatpush1.msra.mxu0 0.0
      %1783 = vmatprep.subr.mxu0 0.0
      %1784 = vmatpush1.msra.mxu0 0.0
      %1785 = vmatprep.subr.mxu0 0.0
      %1786 = vmatpush1.msra.mxu0 0.0
      %1787 = vmatprep.subr.mxu0 0.0
      %1788 = vmatpush1.msra.mxu0 0.0
      %1789 = vmatprep.subr.mxu0 0.0
      %1790 = vmatpush1.msra.mxu0 0.0
      %1791 = vmatprep.subr.mxu0 0.0
      %1792 = vmatpush1.msra.mxu0 0.0
      %1793 = vmatprep.subr.mxu0 0.0
      %1794 = vmatpush1.msra.mxu0 0.0
      %1795 = vmatprep.subr.mxu0 0.0
      %1796 = vmatpush1.msra.mxu0 0.0
      %1797 = vmatprep.subr.mxu0 0.0
      %1798 = vmatpush1.msra.mxu0 0.0
      %1799 = vmatprep.subr.mxu0 0.0
      %1800 = vmatpush1.msra.mxu0 0.0
      %1801 = vmatprep.mubr.f32.mxu0 0.0
      %1802 = vmatmul.mubr.f32.gmra.mrb[0].mxu0 %v984
      %v1803 = vpop.f32.mrb[0].mxu0
      %v1804 = vadd.f32 0.0, %v1803
      %v1805 = vpop.f32.mrb[0].mxu0
      %1806 = vmatprep.mubr.f32.mxu0 0.0
      %1807 = vmatmul.mubr.f32.gmra.mrb[0].mxu0 %v987
      %v1808 = vpop.f32.mrb[0].mxu0
      %v1809 = vadd.f32 0.0, %v1808
      %v1810 = vpop.f32.mrb[0].mxu0
      %1811 = vmatprep.mubr.f32.mxu0 0.0
      %1812 = vmatmul.mubr.f32.gmra.mrb[0].mxu0 %v990
      %v1813 = vpop.f32.mrb[0].mxu0
      %v1814 = vadd.f32 0.0, %v1813
      %v1815 = vpop.f32.mrb[0].mxu0
      %1816 = vmatprep.mubr.f32.mxu0 0.0
      %1817 = vmatmul.mubr.f32.gmra.mrb[0].mxu0 %v993
      %v1818 = vpop.f32.mrb[0].mxu0
      %v1819 = vadd.f32 0.0, %v1818
      %v1820 = vpop.f32.mrb[0].mxu0
      %1821 = vmatprep.mubr.f32.mxu0 0.0
      %1822 = vmatmul.mubr.f32.gmra.mrb[0].mxu0 %v996
      %v1823 = vpop.f32.mrb[0].mxu0
      %v1824 = vadd.f32 0.0, %v1823
      %v1825 = vpop.f32.mrb[0].mxu0
      %1826 = vmatprep.mubr.f32.mxu0 0.0
      %1827 = vmatmul.mubr.f32.gmra.mrb[0].mxu0 %v999
      %v1828 = vpop.f32.mrb[0].mxu0
      %v1829 = vadd.f32 0.0, %v1828
      %v1830 = vpop.f32.mrb[0].mxu0
      %1831 = vmatprep.mubr.f32.mxu0 0.0
      %1832 = vmatmul.mubr.f32.gmra.mrb[0].mxu0 %v1002
      %v1833 = vpop.f32.mrb[0].mxu0
      %v1834 = vadd.f32 0.0, %v1833
      %v1835 = vpop.f32.mrb[0].mxu0
      %1836 = vmatprep.mubr.f32.mxu0 0.0
      %1837 = vmatmul.mubr.f32.gmra.mrb[0].mxu0 %v1732
      %v1838 = vpop.f32.mrb[0].mxu0
      %v1839 = vadd.f32 0.0, %v1838
      %v1840 = vpop.f32.mrb[0].mxu0
      %1841 = vdwg.mxu0
      %v1842 = vadd.f32 %v1721, %v1804
      %v1843 = vadd.f32 %v1722, %v1809
      %v1844 = vadd.f32 %v1723, %v1814
      %v1845 = vadd.f32 %v1724, %v1819
      %v1846 = vadd.f32 %v1725, %v1824
      %v1847 = vadd.f32 %v1726, %v1829
      %v1848 = vadd.f32 %v1727, %v1834
      %v1849 = vadd.f32 %v1728, %v1839
      %s1850 = scalar_lea.vmem %s253, 28
      %v1851 = vld [vmem:[%s1850] sm:$0xf]
      %v1853 = vsel %vm846, %v574, 0
      %v1856 = vsel %vm871, %v1851, 0
      %1858 = vmatprep.subr.mxu0 0.0
      %1859 = vmatpush1.msra.mxu0 %v1856
      %1860 = vmatprep.subr.mxu0 0.0
      %1861 = vmatpush1.msra.mxu0 0.0
      %1862 = vmatprep.subr.mxu0 0.0
      %1863 = vmatpush1.msra.mxu0 0.0
      %1864 = vmatprep.subr.mxu0 0.0
      %1865 = vmatpush1.msra.mxu0 0.0
      %1866 = vmatprep.subr.mxu0 0.0
      %1867 = vmatpush1.msra.mxu0 0.0
      %1868 = vmatprep.subr.mxu0 0.0
      %1869 = vmatpush1.msra.mxu0 0.0
      %1870 = vmatprep.subr.mxu0 0.0
      %1871 = vmatpush1.msra.mxu0 0.0
      %1872 = vmatprep.subr.mxu0 0.0
      %1873 = vmatpush1.msra.mxu0 0.0
      %1874 = vmatprep.subr.mxu0 0.0
      %1875 = vmatpush1.msra.mxu0 0.0
      %1876 = vmatprep.subr.mxu0 0.0
      %1877 = vmatpush1.msra.mxu0 0.0
      %1878 = vmatprep.subr.mxu0 0.0
      %1879 = vmatpush1.msra.mxu0 0.0
      %1880 = vmatprep.subr.mxu0 0.0
      %1881 = vmatpush1.msra.mxu0 0.0
      %1882 = vmatprep.subr.mxu0 0.0
      %1883 = vmatpush1.msra.mxu0 0.0
      %1884 = vmatprep.subr.mxu0 0.0
      %1885 = vmatpush1.msra.mxu0 0.0
      %1886 = vmatprep.subr.mxu0 0.0
      %1887 = vmatpush1.msra.mxu0 0.0
      %1888 = vmatprep.subr.mxu0 0.0
      %1889 = vmatpush1.msra.mxu0 0.0
      %1890 = vmatprep.subr.mxu0 0.0
      %1891 = vmatpush1.msra.mxu0 0.0
      %1892 = vmatprep.subr.mxu0 0.0
      %1893 = vmatpush1.msra.mxu0 0.0
      %1894 = vmatprep.subr.mxu0 0.0
      %1895 = vmatpush1.msra.mxu0 0.0
      %1896 = vmatprep.subr.mxu0 0.0
      %1897 = vmatpush1.msra.mxu0 0.0
      %1898 = vmatprep.subr.mxu0 0.0
      %1899 = vmatpush1.msra.mxu0 0.0
      %1900 = vmatprep.subr.mxu0 0.0
      %1901 = vmatpush1.msra.mxu0 0.0
      %1902 = vmatprep.subr.mxu0 0.0
      %1903 = vmatpush1.msra.mxu0 0.0
      %1904 = vmatprep.subr.mxu0 0.0
      %1905 = vmatpush1.msra.mxu0 0.0
      %1906 = vmatprep.subr.mxu0 0.0
      %1907 = vmatpush1.msra.mxu0 0.0
      %1908 = vmatprep.subr.mxu0 0.0
      %1909 = vmatpush1.msra.mxu0 0.0
      %1910 = vmatprep.subr.mxu0 0.0
      %1911 = vmatpush1.msra.mxu0 0.0
      %1912 = vmatprep.subr.mxu0 0.0
      %1913 = vmatpush1.msra.mxu0 0.0
      %1914 = vmatprep.subr.mxu0 0.0
      %1915 = vmatpush1.msra.mxu0 0.0
      %1916 = vmatprep.subr.mxu0 0.0
      %1917 = vmatpush1.msra.mxu0 0.0
      %1918 = vmatprep.subr.mxu0 0.0
      %1919 = vmatpush1.msra.mxu0 0.0
      %1920 = vmatprep.subr.mxu0 0.0
      %1921 = vmatpush1.msra.mxu0 0.0
      %1922 = vmatprep.mubr.f32.mxu0 0.0
      %1923 = vmatmul.mubr.f32.gmra.mrb[0].mxu0 %v851
      %v1924 = vpop.f32.mrb[0].mxu0
      %v1925 = vadd.f32 0.0, %v1924
      %v1926 = vpop.f32.mrb[0].mxu0
      %1927 = vmatprep.mubr.f32.mxu0 0.0
      %1928 = vmatmul.mubr.f32.gmra.mrb[0].mxu0 %v854
      %v1929 = vpop.f32.mrb[0].mxu0
      %v1930 = vadd.f32 0.0, %v1929
      %v1931 = vpop.f32.mrb[0].mxu0
      %1932 = vmatprep.mubr.f32.mxu0 0.0
      %1933 = vmatmul.mubr.f32.gmra.mrb[0].mxu0 %v857
      %v1934 = vpop.f32.mrb[0].mxu0
      %v1935 = vadd.f32 0.0, %v1934
      %v1936 = vpop.f32.mrb[0].mxu0
      %1937 = vmatprep.mubr.f32.mxu0 0.0
      %1938 = vmatmul.mubr.f32.gmra.mrb[0].mxu0 %v860
      %v1939 = vpop.f32.mrb[0].mxu0
      %v1940 = vadd.f32 0.0, %v1939
      %v1941 = vpop.f32.mrb[0].mxu0
      %1942 = vmatprep.mubr.f32.mxu0 0.0
      %1943 = vmatmul.mubr.f32.gmra.mrb[0].mxu0 %v863
      %v1944 = vpop.f32.mrb[0].mxu0
      %v1945 = vadd.f32 0.0, %v1944
      %v1946 = vpop.f32.mrb[0].mxu0
      %1947 = vmatprep.mubr.f32.mxu0 0.0
      %1948 = vmatmul.mubr.f32.gmra.mrb[0].mxu0 %v866
      %v1949 = vpop.f32.mrb[0].mxu0
      %v1950 = vadd.f32 0.0, %v1949
      %v1951 = vpop.f32.mrb[0].mxu0
      %1952 = vmatprep.mubr.f32.mxu0 0.0
      %1953 = vmatmul.mubr.f32.gmra.mrb[0].mxu0 %v869
      %v1954 = vpop.f32.mrb[0].mxu0
      %v1955 = vadd.f32 0.0, %v1954
      %v1956 = vpop.f32.mrb[0].mxu0
      %1957 = vmatprep.mubr.f32.mxu0 0.0
      %1958 = vmatmul.mubr.f32.gmra.mrb[0].mxu0 %v1853
      %v1959 = vpop.f32.mrb[0].mxu0
      %v1960 = vadd.f32 0.0, %v1959
      %v1961 = vpop.f32.mrb[0].mxu0
      %1962 = vdwg.mxu0
      %v1963 = vadd.f32 %v1842, %v1925
      %v1964 = vadd.f32 %v1843, %v1930
      %v1965 = vadd.f32 %v1844, %v1935
      %v1966 = vadd.f32 %v1845, %v1940
      %v1967 = vadd.f32 %v1846, %v1945
      %v1968 = vadd.f32 %v1847, %v1950
      %v1969 = vadd.f32 %v1848, %v1955
      %v1970 = vadd.f32 %v1849, %v1960
      %v1972 = vrot.slane %v472, 1
      %v1973 = vrot.slane %v473, 1
      %v1974 = vsel %vm1120, %v1972, %v1973
      %s1975 = scalar_lea.vmem %s253, 32
      %v1976 = vld [vmem:[%s1975] sm:$0xf]
      %v1977 = vsel %vm846, %v1974, 0
      %v1980 = vsel %vm871, %v1976, 0
      %1982 = vmatprep.subr.mxu0 0.0
      %1983 = vmatpush1.msra.mxu0 %v1980
      %1984 = vmatprep.subr.mxu0 0.0
      %1985 = vmatpush1.msra.mxu0 0.0
      %1986 = vmatprep.subr.mxu0 0.0
      %1987 = vmatpush1.msra.mxu0 0.0
      %1988 = vmatprep.subr.mxu0 0.0
      %1989 = vmatpush1.msra.mxu0 0.0
      %1990 = vmatprep.subr.mxu0 0.0
      %1991 = vmatpush1.msra.mxu0 0.0
      %1992 = vmatprep.subr.mxu0 0.0
      %1993 = vmatpush1.msra.mxu0 0.0
      %1994 = vmatprep.subr.mxu0 0.0
      %1995 = vmatpush1.msra.mxu0 0.0
      %1996 = vmatprep.subr.mxu0 0.0
      %1997 = vmatpush1.msra.mxu0 0.0
      %1998 = vmatprep.subr.mxu0 0.0
      %1999 = vmatpush1.msra.mxu0 0.0
      %2000 = vmatprep.subr.mxu0 0.0
      %2001 = vmatpush1.msra.mxu0 0.0
      %2002 = vmatprep.subr.mxu0 0.0
      %2003 = vmatpush1.msra.mxu0 0.0
      %2004 = vmatprep.subr.mxu0 0.0
      %2005 = vmatpush1.msra.mxu0 0.0
      %2006 = vmatprep.subr.mxu0 0.0
      %2007 = vmatpush1.msra.mxu0 0.0
      %2008 = vmatprep.subr.mxu0 0.0
      %2009 = vmatpush1.msra.mxu0 0.0
      %2010 = vmatprep.subr.mxu0 0.0
      %2011 = vmatpush1.msra.mxu0 0.0
      %2012 = vmatprep.subr.mxu0 0.0
      %2013 = vmatpush1.msra.mxu0 0.0
      %2014 = vmatprep.subr.mxu0 0.0
      %2015 = vmatpush1.msra.mxu0 0.0
      %2016 = vmatprep.subr.mxu0 0.0
      %2017 = vmatpush1.msra.mxu0 0.0
      %2018 = vmatprep.subr.mxu0 0.0
      %2019 = vmatpush1.msra.mxu0 0.0
      %2020 = vmatprep.subr.mxu0 0.0
      %2021 = vmatpush1.msra.mxu0 0.0
      %2022 = vmatprep.subr.mxu0 0.0
      %2023 = vmatpush1.msra.mxu0 0.0
      %2024 = vmatprep.subr.mxu0 0.0
      %2025 = vmatpush1.msra.mxu0 0.0
      %2026 = vmatprep.subr.mxu0 0.0
      %2027 = vmatpush1.msra.mxu0 0.0
      %2028 = vmatprep.subr.mxu0 0.0
      %2029 = vmatpush1.msra.mxu0 0.0
      %2030 = vmatprep.subr.mxu0 0.0
      %2031 = vmatpush1.msra.mxu0 0.0
      %2032 = vmatprep.subr.mxu0 0.0
      %2033 = vmatpush1.msra.mxu0 0.0
      %2034 = vmatprep.subr.mxu0 0.0
      %2035 = vmatpush1.msra.mxu0 0.0
      %2036 = vmatprep.subr.mxu0 0.0
      %2037 = vmatpush1.msra.mxu0 0.0
      %2038 = vmatprep.subr.mxu0 0.0
      %2039 = vmatpush1.msra.mxu0 0.0
      %2040 = vmatprep.subr.mxu0 0.0
      %2041 = vmatpush1.msra.mxu0 0.0
      %2042 = vmatprep.subr.mxu0 0.0
      %2043 = vmatpush1.msra.mxu0 0.0
      %2044 = vmatprep.subr.mxu0 0.0
      %2045 = vmatpush1.msra.mxu0 0.0
      %2046 = vmatprep.mubr.f32.mxu0 0.0
      %2047 = vmatmul.mubr.f32.gmra.mrb[0].mxu0 %v1149
      %v2048 = vpop.f32.mrb[0].mxu0
      %v2049 = vadd.f32 0.0, %v2048
      %v2050 = vpop.f32.mrb[0].mxu0
      %2051 = vmatprep.mubr.f32.mxu0 0.0
      %2052 = vmatmul.mubr.f32.gmra.mrb[0].mxu0 %v1151
      %v2053 = vpop.f32.mrb[0].mxu0
      %v2054 = vadd.f32 0.0, %v2053
      %v2055 = vpop.f32.mrb[0].mxu0
      %2056 = vmatprep.mubr.f32.mxu0 0.0
      %2057 = vmatmul.mubr.f32.gmra.mrb[0].mxu0 %v1153
      %v2058 = vpop.f32.mrb[0].mxu0
      %v2059 = vadd.f32 0.0, %v2058
      %v2060 = vpop.f32.mrb[0].mxu0
      %2061 = vmatprep.mubr.f32.mxu0 0.0
      %2062 = vmatmul.mubr.f32.gmra.mrb[0].mxu0 %v1155
      %v2063 = vpop.f32.mrb[0].mxu0
      %v2064 = vadd.f32 0.0, %v2063
      %v2065 = vpop.f32.mrb[0].mxu0
      %2066 = vmatprep.mubr.f32.mxu0 0.0
      %2067 = vmatmul.mubr.f32.gmra.mrb[0].mxu0 %v1157
      %v2068 = vpop.f32.mrb[0].mxu0
      %v2069 = vadd.f32 0.0, %v2068
      %v2070 = vpop.f32.mrb[0].mxu0
      %2071 = vmatprep.mubr.f32.mxu0 0.0
      %2072 = vmatmul.mubr.f32.gmra.mrb[0].mxu0 %v1159
      %v2073 = vpop.f32.mrb[0].mxu0
      %v2074 = vadd.f32 0.0, %v2073
      %v2075 = vpop.f32.mrb[0].mxu0
      %2076 = vmatprep.mubr.f32.mxu0 0.0
      %2077 = vmatmul.mubr.f32.gmra.mrb[0].mxu0 %v1161
      %v2078 = vpop.f32.mrb[0].mxu0
      %v2079 = vadd.f32 0.0, %v2078
      %v2080 = vpop.f32.mrb[0].mxu0
      %2081 = vmatprep.mubr.f32.mxu0 0.0
      %2082 = vmatmul.mubr.f32.gmra.mrb[0].mxu0 %v1977
      %v2083 = vpop.f32.mrb[0].mxu0
      %v2084 = vadd.f32 0.0, %v2083
      %v2085 = vpop.f32.mrb[0].mxu0
      %2086 = vdwg.mxu0
      %v2087 = vadd.f32 %v1963, %v2049
      %v2088 = vadd.f32 %v1964, %v2054
      %v2089 = vadd.f32 %v1965, %v2059
      %v2090 = vadd.f32 %v1966, %v2064
      %v2091 = vadd.f32 %v1967, %v2069
      %v2092 = vadd.f32 %v1968, %v2074
      %v2093 = vadd.f32 %v1969, %v2079
      %v2094 = vadd.f32 %v1970, %v2084
      %vm2095 = vcmask 64512
      %2096 = vst.msk [vmem:[%s261] sm:$0xff] %vm2095, %v2087
      %2097 = vst.msk [vmem:[%s261 + $0x8] sm:$0xff] %vm2095, %v2088
      %2098 = vst.msk [vmem:[%s261 + $0x10] sm:$0xff] %vm2095, %v2089
      %2099 = vst.msk [vmem:[%s261 + $0x18] sm:$0xff] %vm2095, %v2090
      %2100 = vst.msk [vmem:[%s261 + $0x20] sm:$0xff] %vm2095, %v2091
      %2101 = vst.msk [vmem:[%s261 + $0x28] sm:$0xff] %vm2095, %v2092
      %2102 = vst.msk [vmem:[%s261 + $0x30] sm:$0xff] %vm2095, %v2093
      %2103 = vst.msk [vmem:[%s261 + $0x38] sm:$0xff] %vm2095, %v2094
      %p2104 = scmp.lt.s32.totalorder %s20, 1
      %s2105 = scalar_select %p2104, %s20, 1
      %p2106 = scmp.lt.s32.totalorder %s21, 0
      %s2107 = scalar_select %p2106, %s21, 0
      %s2108 = smul.addr %s2105, 8
      %s2109 = sadd.s32 %s2107, %s2108
      %s2110 = smul.addr %s2109, 8
      %s2111 = scalar_lea.vmem %s5, %s2110
      // Predicated region
      $region41: #{tpu_custom_call.1} parent=39 // pred_check
        %p2112 = pneg %p163
      $region42: #{tpu_custom_call.1} parent=39 // pred_check_branch
        %2114 = sbr.rel (%p2112) target = $region44
      $region43: #{tpu_custom_call.1} parent=39 // pred_region
        _
      $region44: #{tpu_custom_call.1} parent=39 // pred_fallthru
        _
    $region40: #{tpu_custom_call.1} parent=5 // pred_fallthru
      _
    %p2115 = scmp.le.s32.totalorder 2, %s11
    // Predicated region
    $region45: #{tpu_custom_call.1} parent=5 // pred_check
      %p2116 = pneg %p2115
    $region46: #{tpu_custom_call.1} parent=5 // pred_check_branch
      %2118 = sbr.rel (%p2116) target = $region48
    $region47: #{tpu_custom_call.1} parent=5 // pred_region
      %s2119 = ssub.s32 %s11, 2
      // Predicated region
      $region49: #{tpu_custom_call.1} parent=47 // pred_check
        %p2120 = pneg %p169
      $region50: #{tpu_custom_call.1} parent=47 // pred_check_branch
        %2122 = sbr.rel (%p2120) target = $region52
      $region51: #{tpu_custom_call.1} parent=47 // pred_region
        %p2123 = scmp.lt.s32.totalorder %s22, 1
        %s2124 = scalar_select %p2123, %s22, 1
        %p2125 = scmp.lt.s32.totalorder %s23, 0
        %s2126 = scalar_select %p2125, %s23, 0
        %s2127 = smul.addr %s2124, 8
        %s2128 = sadd.s32 %s2126, %s2127
        %s2129 = smul.addr %s2128, 8
        %s2130 = scalar_lea.vmem %s5, %s2129
      $region52: #{tpu_custom_call.1} parent=47 // pred_fallthru
        _
    $region48: #{tpu_custom_call.1} parent=5 // pred_fallthru
      _
  $region6: #{tpu_custom_call.1} parent=0 // loop_footer
    %s15 = sadd.s32 1, %s11
  $region7: #{tpu_custom_call.1} parent=0 // loop_footer_branch
    %10 = sbr.rel target = $region3
  $region8: #{tpu_custom_call.1} parent=0 // loop_exit
    _

</llo_original>
